<compile_context>
chip_gen: v6e
topology: v6e:2x2x1
jax: 0.10.0
libtpu: 0.0.40
codegen_flags: <defaults>
</compile_context>

<pallas_src>
import jax
import jax.numpy as jnp
from jax.experimental import pallas as pl
from jax.experimental.pallas import tpu as pltpu

# --- problem sizes (small, consistent with an NCHW conv net) ------------------
B, C, H, W = 2, 4, 16, 16          # input  [2, 4, 16, 16]  (NCHW, PyTorch side)
OC = 16                            # conv output channels
KH = KW = 3                        # conv kernel
FC_OUT = 8                         # linear output features
BN_EPS = 1e-5


# ------------------------------ Pallas kernel ---------------------------------
def fused_net_kernel(xp_ref, w_ref, shift_ref, wfc_ref, bfc_ref, o_ref):
    """In-kernel im2col + conv(matmul) + folded-BN shift + ReLU + global
    average pool + Linear, all fused in one VMEM-resident block.

    xp_ref    : [B, H+2, W+2, C]  bf16  SAME-padded NHWC input
    w_ref     : [KH*KW*C, OC]     bf16  conv weight with BN scale folded in
    shift_ref : [1, OC]           f32   folded BN shift (incl. conv bias)
    wfc_ref   : [OC, FC_OUT]      bf16  linear weight
    bfc_ref   : [1, FC_OUT]       f32   linear bias
    o_ref     : [B, FC_OUT]       f32
    """
    # im2col from the ~5 KiB padded input: 9 static slices + lane concat.
    # Slicing/relayout is done in f32 (robust path; elementwise bf16 is not
    # native on v5e anyway); matmul operands are cast to bf16 exactly once.
    xp = xp_ref[...].astype(jnp.float32)               # [B, H+2, W+2, C]
    cols = []
    for dh in range(KH):
        for dw in range(KW):
            cols.append(xp[:, dh:dh + H, dw:dw + W, :])
    patches = jnp.concatenate(cols, axis=-1)            # [B, H, W, KH*KW*C]
    patches = patches.reshape(B * H * W, KH * KW * C).astype(jnp.bfloat16)

    # Convolution as ONE MXU matmul (bf16 operands, f32 accumulation), fused
    # with the folded BatchNorm shift and ReLU.  Stays in VMEM.
    acc = jnp.dot(patches, w_ref[...], preferred_element_type=jnp.float32)
    y = jnp.maximum(acc + shift_ref[...], 0.0)           # [B*H*W, OC] f32

    # Global average pool: layout-preserving reshape (512 -> 2x256 rows) and a
    # sublane reduction — no selector matmul, no extra DMA'd input.
    pooled = y.reshape(B, H * W, OC).sum(axis=1) * (1.0 / (H * W))   # [B, OC]

    # Linear layer (+ bias): bf16 matmul operands, f32 accumulate/elementwise.
    o_ref[...] = (
        jnp.dot(pooled.astype(jnp.bfloat16), wfc_ref[...],
                preferred_element_type=jnp.float32)
        + bfc_ref[...]
    )


def fused_forward(xp, w_fold, shift, w_fc, b_fc):
    flops = (2 * B * H * W * (KH * KW * C) * OC        # conv matmul
             + 4 * B * H * W * OC                      # shift + relu + pool
             + 2 * B * OC * FC_OUT)                    # fc matmul
    bytes_accessed = (xp.size * 2 + w_fold.size * 2 + shift.size * 4
                      + w_fc.size * 2 + b_fc.size * 4 + B * FC_OUT * 4)
    return pl.pallas_call(
        fused_net_kernel,
        out_shape=jax.ShapeDtypeStruct((B, FC_OUT), jnp.float32),
        in_specs=[pl.BlockSpec(memory_space=pltpu.MemorySpace.VMEM)] * 5,
        out_specs=pl.BlockSpec(memory_space=pltpu.MemorySpace.VMEM),
        cost_estimate=pl.CostEstimate(flops=flops, transcendentals=0,
                                      bytes_accessed=bytes_accessed),
    )(xp, w_fold, shift, w_fc, b_fc)


# ------------------------- parameter folding ("refit") ------------------------
def fold_params(params):
    """Fold BatchNorm (and conv bias) into the conv weight / a single shift,
    mirroring the scale/shift math in refit_engine(). Done once."""
    w_conv, b_conv, gamma, beta, r_mean, r_var, w_fc, b_fc = params
    kh, kw, c_in, oc = w_conv.shape
    inv_std = 1.0 / jnp.sqrt(r_var + BN_EPS)
    eff_scale = gamma * inv_std                                  # [OC]
    eff_shift = beta - r_mean * eff_scale + b_conv * eff_scale   # [OC]
    # Fold the BN scale directly into the (HWIO-flattened) conv weight.
    w_fold = (w_conv.reshape(kh * kw * c_in, oc) * eff_scale[None, :]).astype(
        jnp.bfloat16)
    shift = eff_shift.reshape(1, oc).astype(jnp.float32)
    w_fc_b = w_fc.astype(jnp.bfloat16)                           # MXU operand
    b_fc2 = b_fc.reshape(1, -1).astype(jnp.float32)
    return w_fold, shift, w_fc_b, b_fc2


# --------------------------------- glue ---------------------------------------
@jax.jit
def wrapper_forward(x_nchw, folded):
    """TensorRTModuleWrapper.forward == net.forward(x)."""
    w_fold, shift, w_fc, b_fc = folded
    # NCHW -> NHWC, cast to bf16 once, SAME-pad.  One tiny (~5 KiB) producer
    # fusion; the 9x-expanded im2col matrix never round-trips through HBM.
    x_nhwc = jnp.transpose(x_nchw, (0, 2, 3, 1)).astype(jnp.bfloat16)
    xp = jnp.pad(x_nhwc,
                 ((0, 0), (KH // 2, KH // 2), (KW // 2, KW // 2), (0, 0)))
    return fused_forward(xp, w_fold, shift, w_fc, b_fc)


def reference_forward(x_nchw, params):
    """Pure-JAX f32 reference of the same net (independent correctness check)."""
    w_conv, b_conv, gamma, beta, r_mean, r_var, w_fc, b_fc = params
    x_nhwc = jnp.transpose(x_nchw, (0, 2, 3, 1))
    y = jax.lax.conv_general_dilated(
        x_nhwc, w_conv, window_strides=(1, 1), padding="SAME",
        dimension_numbers=("NHWC", "HWIO", "NHWC")) + b_conv
    y = (y - r_mean) / jnp.sqrt(r_var + BN_EPS) * gamma + beta
    y = jnp.maximum(y, 0.0)
    pooled = y.mean(axis=(1, 2))                      # [B, OC]
    return pooled @ w_fc + b_fc


if __name__ == "__main__":
    key = jax.random.PRNGKey(0)
    ks = jax.random.split(key, 9)

    x = jax.random.normal(ks[0], (B, C, H, W), jnp.float32)

    # Deterministic synthetic parameters (shapes per the layer types that
    # refit_engine() handles: Convolution, BatchNorm, Linear).
    w_conv = 0.1 * jax.random.normal(ks[1], (KH, KW, C, OC), jnp.float32)  # HWIO
    b_conv = 0.1 * jax.random.normal(ks[2], (OC,), jnp.float32)
    gamma = jax.random.uniform(ks[3], (OC,), jnp.float32, 0.5, 1.5)
    beta = 0.1 * jax.random.normal(ks[4], (OC,), jnp.float32)
    r_mean = 0.1 * jax.random.normal(ks[5], (OC,), jnp.float32)
    r_var = jax.random.uniform(ks[6], (OC,), jnp.float32, 0.5, 1.5)
    w_fc = 0.1 * jax.random.normal(ks[7], (OC, FC_OUT), jnp.float32)
    b_fc = 0.1 * jax.random.normal(ks[8], (FC_OUT,), jnp.float32)

    params = (w_conv, b_conv, gamma, beta, r_mean, r_var, w_fc, b_fc)

    # One-time fold (the Pallas analogue of refit_engine()).
    folded = fold_params(params)

    out = wrapper_forward(x, folded)
    out = jax.block_until_ready(out)

    ref = reference_forward(x, params)
    assert out.shape == (B, FC_OUT)
    # bf16 matmul operands vs pure-f32 reference: allow small tolerance.
    assert jnp.allclose(out, ref, atol=2e-2, rtol=2e-2), "mismatch vs reference"

    print("KERNEL_OK")
</pallas_src>

<mosaic_0001>
module attributes {stable_mosaic.version = 11 : i64} {
  func.func @fused_net_kernel(%arg0: memref<2x18x18x4xbf16, #tpu.memory_space<vmem>>, %arg1: memref<36x16xbf16, #tpu.memory_space<vmem>>, %arg2: memref<1x16xf32, #tpu.memory_space<vmem>>, %arg3: memref<16x8xbf16, #tpu.memory_space<vmem>>, %arg4: memref<1x8xf32, #tpu.memory_space<vmem>>, %arg5: memref<2x8xf32, #tpu.memory_space<vmem>>) attributes {dimension_semantics = [], scalar_prefetch = 0 : i64, scratch_operands = 0 : i64, tpu.core_type = #tpu.core_type<tc>} {
    %c0 = arith.constant 0 : index
    %c0_0 = arith.constant 0 : index
    %c0_1 = arith.constant 0 : index
    %c0_2 = arith.constant 0 : index
    %0 = vector.load %arg0[%c0, %c0_0, %c0_1, %c0_2] : memref<2x18x18x4xbf16, #tpu.memory_space<vmem>>, vector<2x18x18x4xbf16>
    %1 = arith.extf %0 : vector<2x18x18x4xbf16> to vector<2x18x18x4xf32>
    %2 = vector.extract_strided_slice %1 {offsets = [0, 0, 0, 0], sizes = [2, 16, 16, 4], strides = [1, 1, 1, 1]} : vector<2x18x18x4xf32> to vector<2x16x16x4xf32>
    %3 = vector.extract_strided_slice %1 {offsets = [0, 0, 1, 0], sizes = [2, 16, 16, 4], strides = [1, 1, 1, 1]} : vector<2x18x18x4xf32> to vector<2x16x16x4xf32>
    %4 = vector.extract_strided_slice %1 {offsets = [0, 0, 2, 0], sizes = [2, 16, 16, 4], strides = [1, 1, 1, 1]} : vector<2x18x18x4xf32> to vector<2x16x16x4xf32>
    %5 = vector.extract_strided_slice %1 {offsets = [0, 1, 0, 0], sizes = [2, 16, 16, 4], strides = [1, 1, 1, 1]} : vector<2x18x18x4xf32> to vector<2x16x16x4xf32>
    %6 = vector.extract_strided_slice %1 {offsets = [0, 1, 1, 0], sizes = [2, 16, 16, 4], strides = [1, 1, 1, 1]} : vector<2x18x18x4xf32> to vector<2x16x16x4xf32>
    %7 = vector.extract_strided_slice %1 {offsets = [0, 1, 2, 0], sizes = [2, 16, 16, 4], strides = [1, 1, 1, 1]} : vector<2x18x18x4xf32> to vector<2x16x16x4xf32>
    %8 = vector.extract_strided_slice %1 {offsets = [0, 2, 0, 0], sizes = [2, 16, 16, 4], strides = [1, 1, 1, 1]} : vector<2x18x18x4xf32> to vector<2x16x16x4xf32>
    %9 = vector.extract_strided_slice %1 {offsets = [0, 2, 1, 0], sizes = [2, 16, 16, 4], strides = [1, 1, 1, 1]} : vector<2x18x18x4xf32> to vector<2x16x16x4xf32>
    %10 = vector.extract_strided_slice %1 {offsets = [0, 2, 2, 0], sizes = [2, 16, 16, 4], strides = [1, 1, 1, 1]} : vector<2x18x18x4xf32> to vector<2x16x16x4xf32>
    %11 = tpu.concatenate %2, %3, %4, %5, %6, %7, %8, %9, %10 in 3 : vector<2x16x16x4xf32>, vector<2x16x16x4xf32>, vector<2x16x16x4xf32>, vector<2x16x16x4xf32>, vector<2x16x16x4xf32>, vector<2x16x16x4xf32>, vector<2x16x16x4xf32>, vector<2x16x16x4xf32>, vector<2x16x16x4xf32> -> vector<2x16x16x36xf32>
    %12 = vector.shape_cast %11 : vector<2x16x16x36xf32> to vector<512x36xf32>
    %13 = arith.truncf %12 : vector<512x36xf32> to vector<512x36xbf16>
    %c0_3 = arith.constant 0 : index
    %c0_4 = arith.constant 0 : index
    %14 = vector.load %arg1[%c0_3, %c0_4] : memref<36x16xbf16, #tpu.memory_space<vmem>>, vector<36x16xbf16>
    %cst = arith.constant dense<0.000000e+00> : vector<512x16xf32>
    %15 = tpu.matmul %13, %14, %cst {dimension_numbers = #tpu.dot_dimension_numbers<[1], [0], [0], [1], [0, 0, 1, 1], [], []>} : vector<512x36xbf16>, vector<36x16xbf16>, vector<512x16xf32> -> vector<512x16xf32>
    %c0_5 = arith.constant 0 : index
    %c0_6 = arith.constant 0 : index
    %16 = vector.load %arg2[%c0_5, %c0_6] : memref<1x16xf32, #tpu.memory_space<vmem>>, vector<1x16xf32>
    %17 = vector.broadcast %16 : vector<1x16xf32> to vector<512x16xf32>
    %18 = arith.addf %15, %17 : vector<512x16xf32>
    %cst_7 = arith.constant 0.000000e+00 : f32
    %19 = vector.broadcast %cst_7 : f32 to vector<512x16xf32>
    %20 = arith.maximumf %18, %19 : vector<512x16xf32>
    %21 = vector.shape_cast %20 : vector<512x16xf32> to vector<2x256x16xf32>
    %cst_8 = arith.constant dense<0.000000e+00> : vector<2x16xf32>
    %22 = vector.multi_reduction <add>, %21, %cst_8 [1] : vector<2x256x16xf32> to vector<2x16xf32>
    %cst_9 = arith.constant 3.906250e-03 : f32
    %23 = vector.broadcast %cst_9 : f32 to vector<2x16xf32>
    %24 = arith.mulf %22, %23 : vector<2x16xf32>
    %25 = arith.truncf %24 : vector<2x16xf32> to vector<2x16xbf16>
    %c0_10 = arith.constant 0 : index
    %c0_11 = arith.constant 0 : index
    %26 = vector.load %arg3[%c0_10, %c0_11] : memref<16x8xbf16, #tpu.memory_space<vmem>>, vector<16x8xbf16>
    %cst_12 = arith.constant dense<0.000000e+00> : vector<2x8xf32>
    %27 = tpu.matmul %25, %26, %cst_12 {dimension_numbers = #tpu.dot_dimension_numbers<[1], [0], [0], [1], [0, 0, 1, 1], [], []>} : vector<2x16xbf16>, vector<16x8xbf16>, vector<2x8xf32> -> vector<2x8xf32>
    %c0_13 = arith.constant 0 : index
    %c0_14 = arith.constant 0 : index
    %28 = vector.load %arg4[%c0_13, %c0_14] : memref<1x8xf32, #tpu.memory_space<vmem>>, vector<1x8xf32>
    %29 = vector.broadcast %28 : vector<1x8xf32> to vector<2x8xf32>
    %30 = arith.addf %27, %29 : vector<2x8xf32>
    %c0_15 = arith.constant 0 : index
    %c0_16 = arith.constant 0 : index
    %31 = vector.load %arg5[%c0_15, %c0_16] : memref<2x8xf32, #tpu.memory_space<vmem>>, vector<2x8xf32>
    tpu.vector_store %arg5[%c0_15, %c0_16], %30 {strides = array<i32>} : memref<2x8xf32, #tpu.memory_space<vmem>>, vector<2x8xf32>,
    return
  }
}

</mosaic_0001>

<llo_original>
// kernel: wrapper_forward.1
$region0: #{wrapper_forward.1}
  #allocation0 [shape = 'u32[]', space=smem, size = 0x4, offset = 0x4, fixed_abs, tag = 'smem constant byte address 0x4 - core index']
  #allocation1 [shape = 'u32[144,128]{1,0:T(1,128)}', space=vmem, size = 0x12000, scoped, tag = 'internal scratch']
  %s0 = inlined_call_operand.vmem [shape: bf16[2,18,18,4], index: 0, kind: input, shape index: {}]
  %s1 = inlined_call_operand.vmem [shape: bf16[36,16], index: 1, kind: input, shape index: {}]
  %s2 = inlined_call_operand.vmem [shape: f32[1,16], index: 2, kind: input, shape index: {}]
  %s3 = inlined_call_operand.vmem [shape: bf16[16,8], index: 3, kind: input, shape index: {}]
  %s4 = inlined_call_operand.vmem [shape: f32[1,8], index: 4, kind: input, shape index: {}]
  %s5 = inlined_call_operand.hbm [shape: f32[2,8], index: 5, kind: output, shape index: {}]
  %s6 = sld [smem:[#allocation0]]
  $region30: #{wrapper_forward.1} parent=0
    _
  %s8 = ssub.s32 1, %s6
  %s9 = scalar_select 0, %s8, %s6
  $region1: #{wrapper_forward.1} parent=0
    #allocation2 [shape = 'u8[1024]{0}', space=vmem, size = 0x400, scoped, tag = 'output window, operand 0, single buffered']
    #allocation3 [shape = 's32[1]{0}', space=sflag, size = 0x4, scoped, tag = 'scoped memory for wrapper_forward.1']
    %10 = vsyncpa [#allocation3], 0
    // Predicated region
    $region2: #{wrapper_forward.1} parent=1 // pred_check
      _
    $region3: #{wrapper_forward.1} parent=1 // pred_check_branch
      %12 = sbr.rel (0) target = $region5
    $region4: #{wrapper_forward.1} parent=1 // pred_region
      _
    $region5: #{wrapper_forward.1} parent=1 // pred_fallthru
      _
    // Predicated region
    $region6: #{wrapper_forward.1} parent=1 // pred_check
      _
    $region7: #{wrapper_forward.1} parent=1 // pred_check_branch
      %14 = sbr.rel (0) target = $region9
    $region8: #{wrapper_forward.1} parent=1 // pred_region
      _
    $region9: #{wrapper_forward.1} parent=1 // pred_fallthru
      _
    // Predicated region
    $region10: #{wrapper_forward.1} parent=1 // pred_check
      _
    $region11: #{wrapper_forward.1} parent=1 // pred_check_branch
      %16 = sbr.rel (0) target = $region13
    $region12: #{wrapper_forward.1} parent=1 // pred_region
      _
    $region13: #{wrapper_forward.1} parent=1 // pred_fallthru
      _
    // Predicated region
    $region14: #{wrapper_forward.1} parent=1 // pred_check
      _
    $region15: #{wrapper_forward.1} parent=1 // pred_check_branch
      %18 = sbr.rel (0) target = $region17
    $region16: #{wrapper_forward.1} parent=1 // pred_region
      _
    $region17: #{wrapper_forward.1} parent=1 // pred_fallthru
      _
    // Predicated region
    $region18: #{wrapper_forward.1} parent=1 // pred_check
      _
    $region19: #{wrapper_forward.1} parent=1 // pred_check_branch
      %20 = sbr.rel (0) target = $region21
    $region20: #{wrapper_forward.1} parent=1 // pred_region
      _
    $region21: #{wrapper_forward.1} parent=1 // pred_fallthru
      _
    %v22 = vld [vmem:[%s0] sm:$0xf]
    %v23 = vld [vmem:[%s0 + $0x4] sm:$0xf]
    %v24 = vld [vmem:[%s0 + $0x8] sm:$0x1]
    %v25 = vld [vmem:[%s0 + $0xc] sm:$0xf]
    %v26 = vld [vmem:[%s0 + $0x10] sm:$0xf]
    %v27 = vld [vmem:[%s0 + $0x14] sm:$0x1]
    %v28 = vld [vmem:[%s0 + $0x18] sm:$0xf]
    %v29 = vld [vmem:[%s0 + $0x1c] sm:$0xf]
    %v30 = vld [vmem:[%s0 + $0x20] sm:$0x1]
    %v31 = vld [vmem:[%s0 + $0x24] sm:$0xf]
    %v32 = vld [vmem:[%s0 + $0x28] sm:$0xf]
    %v33 = vld [vmem:[%s0 + $0x2c] sm:$0x1]
    %v34 = vld [vmem:[%s0 + $0x30] sm:$0xf]
    %v35 = vld [vmem:[%s0 + $0x34] sm:$0xf]
    %v36 = vld [vmem:[%s0 + $0x38] sm:$0x1]
    %v37 = vld [vmem:[%s0 + $0x3c] sm:$0xf]
    %v38 = vld [vmem:[%s0 + $0x40] sm:$0xf]
    %v39 = vld [vmem:[%s0 + $0x44] sm:$0x1]
    %v40 = vld [vmem:[%s0 + $0x48] sm:$0xf]
    %v41 = vld [vmem:[%s0 + $0x4c] sm:$0xf]
    %v42 = vld [vmem:[%s0 + $0x50] sm:$0x1]
    %v43 = vld [vmem:[%s0 + $0x54] sm:$0xf]
    %v44 = vld [vmem:[%s0 + $0x58] sm:$0xf]
    %v45 = vld [vmem:[%s0 + $0x5c] sm:$0x1]
    %v46 = vld [vmem:[%s0 + $0x60] sm:$0xf]
    %v47 = vld [vmem:[%s0 + $0x64] sm:$0xf]
    %v48 = vld [vmem:[%s0 + $0x68] sm:$0x1]
    %v49 = vld [vmem:[%s0 + $0x6c] sm:$0xf]
    %v50 = vld [vmem:[%s0 + $0x70] sm:$0xf]
    %v51 = vld [vmem:[%s0 + $0x74] sm:$0x1]
    %v52 = vld [vmem:[%s0 + $0x78] sm:$0xf]
    %v53 = vld [vmem:[%s0 + $0x7c] sm:$0xf]
    %v54 = vld [vmem:[%s0 + $0x80] sm:$0x1]
    %v55 = vld [vmem:[%s0 + $0x84] sm:$0xf]
    %v56 = vld [vmem:[%s0 + $0x88] sm:$0xf]
    %v57 = vld [vmem:[%s0 + $0x8c] sm:$0x1]
    %v58 = vld [vmem:[%s0 + $0x90] sm:$0xf]
    %v59 = vld [vmem:[%s0 + $0x94] sm:$0xf]
    %v60 = vld [vmem:[%s0 + $0x98] sm:$0x1]
    %v61 = vld [vmem:[%s0 + $0x9c] sm:$0xf]
    %v62 = vld [vmem:[%s0 + $0xa0] sm:$0xf]
    %v63 = vld [vmem:[%s0 + $0xa4] sm:$0x1]
    %v64 = vld [vmem:[%s0 + $0xa8] sm:$0xf]
    %v65 = vld [vmem:[%s0 + $0xac] sm:$0xf]
    %v66 = vld [vmem:[%s0 + $0xb0] sm:$0x1]
    %v67 = vld [vmem:[%s0 + $0xb4] sm:$0xf]
    %v68 = vld [vmem:[%s0 + $0xb8] sm:$0xf]
    %v69 = vld [vmem:[%s0 + $0xbc] sm:$0x1]
    %v70 = vld [vmem:[%s0 + $0xc0] sm:$0xf]
    %v71 = vld [vmem:[%s0 + $0xc4] sm:$0xf]
    %v72 = vld [vmem:[%s0 + $0xc8] sm:$0x1]
    %v73 = vld [vmem:[%s0 + $0xcc] sm:$0xf]
    %v74 = vld [vmem:[%s0 + $0xd0] sm:$0xf]
    %v75 = vld [vmem:[%s0 + $0xd4] sm:$0x1]
    %v76 = vld [vmem:[%s0 + $0xd8] sm:$0xf]
    %v77 = vld [vmem:[%s0 + $0xdc] sm:$0xf]
    %v78 = vld [vmem:[%s0 + $0xe0] sm:$0x1]
    %v79 = vld [vmem:[%s0 + $0xe4] sm:$0xf]
    %v80 = vld [vmem:[%s0 + $0xe8] sm:$0xf]
    %v81 = vld [vmem:[%s0 + $0xec] sm:$0x1]
    %v82 = vld [vmem:[%s0 + $0xf0] sm:$0xf]
    %v83 = vld [vmem:[%s0 + $0xf4] sm:$0xf]
    %v84 = vld [vmem:[%s0 + $0xf8] sm:$0x1]
    %v85 = vld [vmem:[%s0 + $0xfc] sm:$0xf]
    %v86 = vld [vmem:[%s0 + $0x100] sm:$0xf]
    %v87 = vld [vmem:[%s0 + $0x104] sm:$0x1]
    %v88 = vld [vmem:[%s0 + $0x108] sm:$0xf]
    %v89 = vld [vmem:[%s0 + $0x10c] sm:$0xf]
    %v90 = vld [vmem:[%s0 + $0x110] sm:$0x1]
    %v91 = vld [vmem:[%s0 + $0x114] sm:$0xf]
    %v92 = vld [vmem:[%s0 + $0x118] sm:$0xf]
    %v93 = vld [vmem:[%s0 + $0x11c] sm:$0x1]
    %v94 = vld [vmem:[%s0 + $0x120] sm:$0xf]
    %v95 = vld [vmem:[%s0 + $0x124] sm:$0xf]
    %v96 = vld [vmem:[%s0 + $0x128] sm:$0x1]
    %v97 = vld [vmem:[%s0 + $0x12c] sm:$0xf]
    %v98 = vld [vmem:[%s0 + $0x130] sm:$0xf]
    %v99 = vld [vmem:[%s0 + $0x134] sm:$0x1]
    %v100 = vld [vmem:[%s0 + $0x138] sm:$0xf]
    %v101 = vld [vmem:[%s0 + $0x13c] sm:$0xf]
    %v102 = vld [vmem:[%s0 + $0x140] sm:$0x1]
    %v103 = vld [vmem:[%s0 + $0x144] sm:$0xf]
    %v104 = vld [vmem:[%s0 + $0x148] sm:$0xf]
    %v105 = vld [vmem:[%s0 + $0x14c] sm:$0x1]
    %v106 = vld [vmem:[%s0 + $0x150] sm:$0xf]
    %v107 = vld [vmem:[%s0 + $0x154] sm:$0xf]
    %v108 = vld [vmem:[%s0 + $0x158] sm:$0x1]
    %v109 = vld [vmem:[%s0 + $0x15c] sm:$0xf]
    %v110 = vld [vmem:[%s0 + $0x160] sm:$0xf]
    %v111 = vld [vmem:[%s0 + $0x164] sm:$0x1]
    %v112 = vld [vmem:[%s0 + $0x168] sm:$0xf]
    %v113 = vld [vmem:[%s0 + $0x16c] sm:$0xf]
    %v114 = vld [vmem:[%s0 + $0x170] sm:$0x1]
    %v115 = vld [vmem:[%s0 + $0x174] sm:$0xf]
    %v116 = vld [vmem:[%s0 + $0x178] sm:$0xf]
    %v117 = vld [vmem:[%s0 + $0x17c] sm:$0x1]
    %v118 = vld [vmem:[%s0 + $0x180] sm:$0xf]
    %v119 = vld [vmem:[%s0 + $0x184] sm:$0xf]
    %v120 = vld [vmem:[%s0 + $0x188] sm:$0x1]
    %v121 = vld [vmem:[%s0 + $0x18c] sm:$0xf]
    %v122 = vld [vmem:[%s0 + $0x190] sm:$0xf]
    %v123 = vld [vmem:[%s0 + $0x194] sm:$0x1]
    %v124 = vld [vmem:[%s0 + $0x198] sm:$0xf]
    %v125 = vld [vmem:[%s0 + $0x19c] sm:$0xf]
    %v126 = vld [vmem:[%s0 + $0x1a0] sm:$0x1]
    %v127 = vld [vmem:[%s0 + $0x1a4] sm:$0xf]
    %v128 = vld [vmem:[%s0 + $0x1a8] sm:$0xf]
    %v129 = vld [vmem:[%s0 + $0x1ac] sm:$0x1]
    %v130 = vunpack.c.l.bf16 %v22
    %v131 = vunpack.c.l.bf16 %v23
    %v132 = vunpack.c.l.bf16 %v24
    %v133 = vunpack.c.l.bf16 %v25
    %v134 = vunpack.c.l.bf16 %v26
    %v135 = vunpack.c.l.bf16 %v27
    %v136 = vunpack.c.l.bf16 %v28
    %v137 = vunpack.c.l.bf16 %v29
    %v138 = vunpack.c.l.bf16 %v30
    %v139 = vunpack.c.l.bf16 %v31
    %v140 = vunpack.c.l.bf16 %v32
    %v141 = vunpack.c.l.bf16 %v33
    %v142 = vunpack.c.l.bf16 %v34
    %v143 = vunpack.c.l.bf16 %v35
    %v144 = vunpack.c.l.bf16 %v36
    %v145 = vunpack.c.l.bf16 %v37
    %v146 = vunpack.c.l.bf16 %v38
    %v147 = vunpack.c.l.bf16 %v39
    %v148 = vunpack.c.l.bf16 %v40
    %v149 = vunpack.c.l.bf16 %v41
    %v150 = vunpack.c.l.bf16 %v42
    %v151 = vunpack.c.l.bf16 %v43
    %v152 = vunpack.c.l.bf16 %v44
    %v153 = vunpack.c.l.bf16 %v45
    %v154 = vunpack.c.l.bf16 %v46
    %v155 = vunpack.c.l.bf16 %v47
    %v156 = vunpack.c.l.bf16 %v48
    %v157 = vunpack.c.l.bf16 %v49
    %v158 = vunpack.c.l.bf16 %v50
    %v159 = vunpack.c.l.bf16 %v51
    %v160 = vunpack.c.l.bf16 %v52
    %v161 = vunpack.c.l.bf16 %v53
    %v162 = vunpack.c.l.bf16 %v54
    %v163 = vunpack.c.l.bf16 %v55
    %v164 = vunpack.c.l.bf16 %v56
    %v165 = vunpack.c.l.bf16 %v57
    %v166 = vunpack.c.l.bf16 %v58
    %v167 = vunpack.c.l.bf16 %v59
    %v168 = vunpack.c.l.bf16 %v60
    %v169 = vunpack.c.l.bf16 %v61
    %v170 = vunpack.c.l.bf16 %v62
    %v171 = vunpack.c.l.bf16 %v63
    %v172 = vunpack.c.l.bf16 %v64
    %v173 = vunpack.c.l.bf16 %v65
    %v174 = vunpack.c.l.bf16 %v66
    %v175 = vunpack.c.l.bf16 %v67
    %v176 = vunpack.c.l.bf16 %v68
    %v177 = vunpack.c.l.bf16 %v69
    %v178 = vunpack.c.l.bf16 %v70
    %v179 = vunpack.c.l.bf16 %v71
    %v180 = vunpack.c.l.bf16 %v72
    %v181 = vunpack.c.l.bf16 %v73
    %v182 = vunpack.c.l.bf16 %v74
    %v183 = vunpack.c.l.bf16 %v75
    %v184 = vunpack.c.l.bf16 %v76
    %v185 = vunpack.c.l.bf16 %v77
    %v186 = vunpack.c.l.bf16 %v78
    %v187 = vunpack.c.l.bf16 %v79
    %v188 = vunpack.c.l.bf16 %v80
    %v189 = vunpack.c.l.bf16 %v81
    %v190 = vunpack.c.l.bf16 %v82
    %v191 = vunpack.c.l.bf16 %v83
    %v192 = vunpack.c.l.bf16 %v84
    %v193 = vunpack.c.l.bf16 %v85
    %v194 = vunpack.c.l.bf16 %v86
    %v195 = vunpack.c.l.bf16 %v87
    %v196 = vunpack.c.l.bf16 %v88
    %v197 = vunpack.c.l.bf16 %v89
    %v198 = vunpack.c.l.bf16 %v90
    %v199 = vunpack.c.l.bf16 %v91
    %v200 = vunpack.c.l.bf16 %v92
    %v201 = vunpack.c.l.bf16 %v93
    %v202 = vunpack.c.l.bf16 %v94
    %v203 = vunpack.c.l.bf16 %v95
    %v204 = vunpack.c.l.bf16 %v96
    %v205 = vunpack.c.l.bf16 %v97
    %v206 = vunpack.c.l.bf16 %v98
    %v207 = vunpack.c.l.bf16 %v99
    %v208 = vunpack.c.l.bf16 %v100
    %v209 = vunpack.c.l.bf16 %v101
    %v210 = vunpack.c.l.bf16 %v102
    %v211 = vunpack.c.l.bf16 %v103
    %v212 = vunpack.c.l.bf16 %v104
    %v213 = vunpack.c.l.bf16 %v105
    %v214 = vunpack.c.l.bf16 %v106
    %v215 = vunpack.c.l.bf16 %v107
    %v216 = vunpack.c.l.bf16 %v108
    %v217 = vunpack.c.l.bf16 %v109
    %v218 = vunpack.c.l.bf16 %v110
    %v219 = vunpack.c.l.bf16 %v111
    %v220 = vunpack.c.l.bf16 %v112
    %v221 = vunpack.c.l.bf16 %v113
    %v222 = vunpack.c.l.bf16 %v114
    %v223 = vunpack.c.l.bf16 %v115
    %v224 = vunpack.c.l.bf16 %v116
    %v225 = vunpack.c.l.bf16 %v117
    %v226 = vunpack.c.l.bf16 %v118
    %v227 = vunpack.c.l.bf16 %v119
    %v228 = vunpack.c.l.bf16 %v120
    %v229 = vunpack.c.l.bf16 %v121
    %v230 = vunpack.c.l.bf16 %v122
    %v231 = vunpack.c.l.bf16 %v123
    %v232 = vunpack.c.l.bf16 %v124
    %v233 = vunpack.c.l.bf16 %v125
    %v234 = vunpack.c.l.bf16 %v126
    %v235 = vunpack.c.l.bf16 %v127
    %v236 = vunpack.c.l.bf16 %v128
    %v237 = vunpack.c.l.bf16 %v129
    %vm334 = vcmask 1046528
    %v335 = vrot.slane %v130, 1
    %v336 = vrot.slane %v131, 1
    %v337 = vsel %vm334, %v335, %v336
    %v338 = vrot.slane %v132, 1
    %v339 = vsel %vm334, %v336, %v338
    %v340 = vrot.slane %v133, 1
    %v341 = vrot.slane %v134, 1
    %v342 = vsel %vm334, %v340, %v341
    %v343 = vrot.slane %v135, 1
    %v344 = vsel %vm334, %v341, %v343
    %v345 = vrot.slane %v136, 1
    %v346 = vrot.slane %v137, 1
    %v347 = vsel %vm334, %v345, %v346
    %v348 = vrot.slane %v138, 1
    %v349 = vsel %vm334, %v346, %v348
    %v350 = vrot.slane %v139, 1
    %v351 = vrot.slane %v140, 1
    %v352 = vsel %vm334, %v350, %v351
    %v353 = vrot.slane %v141, 1
    %v354 = vsel %vm334, %v351, %v353
    %v355 = vrot.slane %v142, 1
    %v356 = vrot.slane %v143, 1
    %v357 = vsel %vm334, %v355, %v356
    %v358 = vrot.slane %v144, 1
    %v359 = vsel %vm334, %v356, %v358
    %v360 = vrot.slane %v145, 1
    %v361 = vrot.slane %v146, 1
    %v362 = vsel %vm334, %v360, %v361
    %v363 = vrot.slane %v147, 1
    %v364 = vsel %vm334, %v361, %v363
    %v365 = vrot.slane %v148, 1
    %v366 = vrot.slane %v149, 1
    %v367 = vsel %vm334, %v365, %v366
    %v368 = vrot.slane %v150, 1
    %v369 = vsel %vm334, %v366, %v368
    %v370 = vrot.slane %v151, 1
    %v371 = vrot.slane %v152, 1
    %v372 = vsel %vm334, %v370, %v371
    %v373 = vrot.slane %v153, 1
    %v374 = vsel %vm334, %v371, %v373
    %v375 = vrot.slane %v154, 1
    %v376 = vrot.slane %v155, 1
    %v377 = vsel %vm334, %v375, %v376
    %v378 = vrot.slane %v156, 1
    %v379 = vsel %vm334, %v376, %v378
    %v380 = vrot.slane %v157, 1
    %v381 = vrot.slane %v158, 1
    %v382 = vsel %vm334, %v380, %v381
    %v383 = vrot.slane %v159, 1
    %v384 = vsel %vm334, %v381, %v383
    %v385 = vrot.slane %v160, 1
    %v386 = vrot.slane %v161, 1
    %v387 = vsel %vm334, %v385, %v386
    %v388 = vrot.slane %v162, 1
    %v389 = vsel %vm334, %v386, %v388
    %v390 = vrot.slane %v163, 1
    %v391 = vrot.slane %v164, 1
    %v392 = vsel %vm334, %v390, %v391
    %v393 = vrot.slane %v165, 1
    %v394 = vsel %vm334, %v391, %v393
    %v395 = vrot.slane %v166, 1
    %v396 = vrot.slane %v167, 1
    %v397 = vsel %vm334, %v395, %v396
    %v398 = vrot.slane %v168, 1
    %v399 = vsel %vm334, %v396, %v398
    %v400 = vrot.slane %v169, 1
    %v401 = vrot.slane %v170, 1
    %v402 = vsel %vm334, %v400, %v401
    %v403 = vrot.slane %v171, 1
    %v404 = vsel %vm334, %v401, %v403
    %v405 = vrot.slane %v172, 1
    %v406 = vrot.slane %v173, 1
    %v407 = vsel %vm334, %v405, %v406
    %v408 = vrot.slane %v174, 1
    %v409 = vsel %vm334, %v406, %v408
    %v410 = vrot.slane %v175, 1
    %v411 = vrot.slane %v176, 1
    %v412 = vsel %vm334, %v410, %v411
    %v413 = vrot.slane %v177, 1
    %v414 = vsel %vm334, %v411, %v413
    %v415 = vrot.slane %v184, 1
    %v416 = vrot.slane %v185, 1
    %v417 = vsel %vm334, %v415, %v416
    %v418 = vrot.slane %v186, 1
    %v419 = vsel %vm334, %v416, %v418
    %v420 = vrot.slane %v187, 1
    %v421 = vrot.slane %v188, 1
    %v422 = vsel %vm334, %v420, %v421
    %v423 = vrot.slane %v189, 1
    %v424 = vsel %vm334, %v421, %v423
    %v425 = vrot.slane %v190, 1
    %v426 = vrot.slane %v191, 1
    %v427 = vsel %vm334, %v425, %v426
    %v428 = vrot.slane %v192, 1
    %v429 = vsel %vm334, %v426, %v428
    %v430 = vrot.slane %v193, 1
    %v431 = vrot.slane %v194, 1
    %v432 = vsel %vm334, %v430, %v431
    %v433 = vrot.slane %v195, 1
    %v434 = vsel %vm334, %v431, %v433
    %v435 = vrot.slane %v196, 1
    %v436 = vrot.slane %v197, 1
    %v437 = vsel %vm334, %v435, %v436
    %v438 = vrot.slane %v198, 1
    %v439 = vsel %vm334, %v436, %v438
    %v440 = vrot.slane %v199, 1
    %v441 = vrot.slane %v200, 1
    %v442 = vsel %vm334, %v440, %v441
    %v443 = vrot.slane %v201, 1
    %v444 = vsel %vm334, %v441, %v443
    %v445 = vrot.slane %v202, 1
    %v446 = vrot.slane %v203, 1
    %v447 = vsel %vm334, %v445, %v446
    %v448 = vrot.slane %v204, 1
    %v449 = vsel %vm334, %v446, %v448
    %v450 = vrot.slane %v205, 1
    %v451 = vrot.slane %v206, 1
    %v452 = vsel %vm334, %v450, %v451
    %v453 = vrot.slane %v207, 1
    %v454 = vsel %vm334, %v451, %v453
    %v455 = vrot.slane %v208, 1
    %v456 = vrot.slane %v209, 1
    %v457 = vsel %vm334, %v455, %v456
    %v458 = vrot.slane %v210, 1
    %v459 = vsel %vm334, %v456, %v458
    %v460 = vrot.slane %v211, 1
    %v461 = vrot.slane %v212, 1
    %v462 = vsel %vm334, %v460, %v461
    %v463 = vrot.slane %v213, 1
    %v464 = vsel %vm334, %v461, %v463
    %v465 = vrot.slane %v214, 1
    %v466 = vrot.slane %v215, 1
    %v467 = vsel %vm334, %v465, %v466
    %v468 = vrot.slane %v216, 1
    %v469 = vsel %vm334, %v466, %v468
    %v470 = vrot.slane %v217, 1
    %v471 = vrot.slane %v218, 1
    %v472 = vsel %vm334, %v470, %v471
    %v473 = vrot.slane %v219, 1
    %v474 = vsel %vm334, %v471, %v473
    %v475 = vrot.slane %v220, 1
    %v476 = vrot.slane %v221, 1
    %v477 = vsel %vm334, %v475, %v476
    %v478 = vrot.slane %v222, 1
    %v479 = vsel %vm334, %v476, %v478
    %v480 = vrot.slane %v223, 1
    %v481 = vrot.slane %v224, 1
    %v482 = vsel %vm334, %v480, %v481
    %v483 = vrot.slane %v225, 1
    %v484 = vsel %vm334, %v481, %v483
    %v485 = vrot.slane %v226, 1
    %v486 = vrot.slane %v227, 1
    %v487 = vsel %vm334, %v485, %v486
    %v488 = vrot.slane %v228, 1
    %v489 = vsel %vm334, %v486, %v488
    %v490 = vrot.slane %v229, 1
    %v491 = vrot.slane %v230, 1
    %v492 = vsel %vm334, %v490, %v491
    %v493 = vrot.slane %v231, 1
    %v494 = vsel %vm334, %v491, %v493
    %495 = vrot.lane.b32.xlu0 %v337, 4
    %v496 = vpop.permute.xlu0 %495
    %497 = vrot.lane.b32.xlu0 %v339, 4
    %v498 = vpop.permute.xlu0 %497
    %499 = vrot.lane.b32.xlu0 %v342, 4
    %v500 = vpop.permute.xlu0 %499
    %501 = vrot.lane.b32.xlu0 %v344, 4
    %v502 = vpop.permute.xlu0 %501
    %503 = vrot.lane.b32.xlu0 %v347, 4
    %v504 = vpop.permute.xlu0 %503
    %505 = vrot.lane.b32.xlu0 %v349, 4
    %v506 = vpop.permute.xlu0 %505
    %507 = vrot.lane.b32.xlu0 %v352, 4
    %v508 = vpop.permute.xlu0 %507
    %509 = vrot.lane.b32.xlu0 %v354, 4
    %v510 = vpop.permute.xlu0 %509
    %511 = vrot.lane.b32.xlu0 %v357, 4
    %v512 = vpop.permute.xlu0 %511
    %513 = vrot.lane.b32.xlu0 %v359, 4
    %v514 = vpop.permute.xlu0 %513
    %515 = vrot.lane.b32.xlu0 %v362, 4
    %v516 = vpop.permute.xlu0 %515
    %517 = vrot.lane.b32.xlu0 %v364, 4
    %v518 = vpop.permute.xlu0 %517
    %519 = vrot.lane.b32.xlu0 %v367, 4
    %v520 = vpop.permute.xlu0 %519
    %521 = vrot.lane.b32.xlu0 %v369, 4
    %v522 = vpop.permute.xlu0 %521
    %523 = vrot.lane.b32.xlu0 %v372, 4
    %v524 = vpop.permute.xlu0 %523
    %525 = vrot.lane.b32.xlu0 %v374, 4
    %v526 = vpop.permute.xlu0 %525
    %527 = vrot.lane.b32.xlu0 %v377, 4
    %v528 = vpop.permute.xlu0 %527
    %529 = vrot.lane.b32.xlu0 %v379, 4
    %v530 = vpop.permute.xlu0 %529
    %531 = vrot.lane.b32.xlu0 %v382, 4
    %v532 = vpop.permute.xlu0 %531
    %533 = vrot.lane.b32.xlu0 %v384, 4
    %v534 = vpop.permute.xlu0 %533
    %535 = vrot.lane.b32.xlu0 %v387, 4
    %v536 = vpop.permute.xlu0 %535
    %537 = vrot.lane.b32.xlu0 %v389, 4
    %v538 = vpop.permute.xlu0 %537
    %539 = vrot.lane.b32.xlu0 %v392, 4
    %v540 = vpop.permute.xlu0 %539
    %541 = vrot.lane.b32.xlu0 %v394, 4
    %v542 = vpop.permute.xlu0 %541
    %543 = vrot.lane.b32.xlu0 %v397, 4
    %v544 = vpop.permute.xlu0 %543
    %545 = vrot.lane.b32.xlu0 %v399, 4
    %v546 = vpop.permute.xlu0 %545
    %547 = vrot.lane.b32.xlu0 %v402, 4
    %v548 = vpop.permute.xlu0 %547
    %549 = vrot.lane.b32.xlu0 %v404, 4
    %v550 = vpop.permute.xlu0 %549
    %551 = vrot.lane.b32.xlu0 %v407, 4
    %v552 = vpop.permute.xlu0 %551
    %553 = vrot.lane.b32.xlu0 %v409, 4
    %v554 = vpop.permute.xlu0 %553
    %555 = vrot.lane.b32.xlu0 %v412, 4
    %v556 = vpop.permute.xlu0 %555
    %557 = vrot.lane.b32.xlu0 %v414, 4
    %v558 = vpop.permute.xlu0 %557
    %559 = vrot.lane.b32.xlu0 %v417, 4
    %v560 = vpop.permute.xlu0 %559
    %561 = vrot.lane.b32.xlu0 %v419, 4
    %v562 = vpop.permute.xlu0 %561
    %563 = vrot.lane.b32.xlu0 %v422, 4
    %v564 = vpop.permute.xlu0 %563
    %565 = vrot.lane.b32.xlu0 %v424, 4
    %v566 = vpop.permute.xlu0 %565
    %567 = vrot.lane.b32.xlu0 %v427, 4
    %v568 = vpop.permute.xlu0 %567
    %569 = vrot.lane.b32.xlu0 %v429, 4
    %v570 = vpop.permute.xlu0 %569
    %571 = vrot.lane.b32.xlu0 %v432, 4
    %v572 = vpop.permute.xlu0 %571
    %573 = vrot.lane.b32.xlu0 %v434, 4
    %v574 = vpop.permute.xlu0 %573
    %575 = vrot.lane.b32.xlu0 %v437, 4
    %v576 = vpop.permute.xlu0 %575
    %577 = vrot.lane.b32.xlu0 %v439, 4
    %v578 = vpop.permute.xlu0 %577
    %579 = vrot.lane.b32.xlu0 %v442, 4
    %v580 = vpop.permute.xlu0 %579
    %581 = vrot.lane.b32.xlu0 %v444, 4
    %v582 = vpop.permute.xlu0 %581
    %583 = vrot.lane.b32.xlu0 %v447, 4
    %v584 = vpop.permute.xlu0 %583
    %585 = vrot.lane.b32.xlu0 %v449, 4
    %v586 = vpop.permute.xlu0 %585
    %587 = vrot.lane.b32.xlu0 %v452, 4
    %v588 = vpop.permute.xlu0 %587
    %589 = vrot.lane.b32.xlu0 %v454, 4
    %v590 = vpop.permute.xlu0 %589
    %591 = vrot.lane.b32.xlu0 %v457, 4
    %v592 = vpop.permute.xlu0 %591
    %593 = vrot.lane.b32.xlu0 %v459, 4
    %v594 = vpop.permute.xlu0 %593
    %595 = vrot.lane.b32.xlu0 %v462, 4
    %v596 = vpop.permute.xlu0 %595
    %597 = vrot.lane.b32.xlu0 %v464, 4
    %v598 = vpop.permute.xlu0 %597
    %599 = vrot.lane.b32.xlu0 %v467, 4
    %v600 = vpop.permute.xlu0 %599
    %601 = vrot.lane.b32.xlu0 %v469, 4
    %v602 = vpop.permute.xlu0 %601
    %603 = vrot.lane.b32.xlu0 %v472, 4
    %v604 = vpop.permute.xlu0 %603
    %605 = vrot.lane.b32.xlu0 %v474, 4
    %v606 = vpop.permute.xlu0 %605
    %607 = vrot.lane.b32.xlu0 %v477, 4
    %v608 = vpop.permute.xlu0 %607
    %609 = vrot.lane.b32.xlu0 %v479, 4
    %v610 = vpop.permute.xlu0 %609
    %611 = vrot.lane.b32.xlu0 %v482, 4
    %v612 = vpop.permute.xlu0 %611
    %613 = vrot.lane.b32.xlu0 %v484, 4
    %v614 = vpop.permute.xlu0 %613
    %615 = vrot.lane.b32.xlu0 %v487, 4
    %v616 = vpop.permute.xlu0 %615
    %617 = vrot.lane.b32.xlu0 %v489, 4
    %v618 = vpop.permute.xlu0 %617
    %619 = vrot.lane.b32.xlu0 %v492, 4
    %v620 = vpop.permute.xlu0 %619
    %621 = vrot.lane.b32.xlu0 %v494, 4
    %v622 = vpop.permute.xlu0 %621
    %vm687 = vcmask 1045504
    %v688 = vrot.slane %v130, 2
    %v689 = vrot.slane %v131, 2
    %v690 = vsel %vm687, %v688, %v689
    %v691 = vrot.slane %v132, 2
    %v692 = vsel %vm687, %v689, %v691
    %v693 = vrot.slane %v133, 2
    %v694 = vrot.slane %v134, 2
    %v695 = vsel %vm687, %v693, %v694
    %v696 = vrot.slane %v135, 2
    %v697 = vsel %vm687, %v694, %v696
    %v698 = vrot.slane %v136, 2
    %v699 = vrot.slane %v137, 2
    %v700 = vsel %vm687, %v698, %v699
    %v701 = vrot.slane %v138, 2
    %v702 = vsel %vm687, %v699, %v701
    %v703 = vrot.slane %v139, 2
    %v704 = vrot.slane %v140, 2
    %v705 = vsel %vm687, %v703, %v704
    %v706 = vrot.slane %v141, 2
    %v707 = vsel %vm687, %v704, %v706
    %v708 = vrot.slane %v142, 2
    %v709 = vrot.slane %v143, 2
    %v710 = vsel %vm687, %v708, %v709
    %v711 = vrot.slane %v144, 2
    %v712 = vsel %vm687, %v709, %v711
    %v713 = vrot.slane %v145, 2
    %v714 = vrot.slane %v146, 2
    %v715 = vsel %vm687, %v713, %v714
    %v716 = vrot.slane %v147, 2
    %v717 = vsel %vm687, %v714, %v716
    %v718 = vrot.slane %v148, 2
    %v719 = vrot.slane %v149, 2
    %v720 = vsel %vm687, %v718, %v719
    %v721 = vrot.slane %v150, 2
    %v722 = vsel %vm687, %v719, %v721
    %v723 = vrot.slane %v151, 2
    %v724 = vrot.slane %v152, 2
    %v725 = vsel %vm687, %v723, %v724
    %v726 = vrot.slane %v153, 2
    %v727 = vsel %vm687, %v724, %v726
    %v728 = vrot.slane %v154, 2
    %v729 = vrot.slane %v155, 2
    %v730 = vsel %vm687, %v728, %v729
    %v731 = vrot.slane %v156, 2
    %v732 = vsel %vm687, %v729, %v731
    %v733 = vrot.slane %v157, 2
    %v734 = vrot.slane %v158, 2
    %v735 = vsel %vm687, %v733, %v734
    %v736 = vrot.slane %v159, 2
    %v737 = vsel %vm687, %v734, %v736
    %v738 = vrot.slane %v160, 2
    %v739 = vrot.slane %v161, 2
    %v740 = vsel %vm687, %v738, %v739
    %v741 = vrot.slane %v162, 2
    %v742 = vsel %vm687, %v739, %v741
    %v743 = vrot.slane %v163, 2
    %v744 = vrot.slane %v164, 2
    %v745 = vsel %vm687, %v743, %v744
    %v746 = vrot.slane %v165, 2
    %v747 = vsel %vm687, %v744, %v746
    %v748 = vrot.slane %v166, 2
    %v749 = vrot.slane %v167, 2
    %v750 = vsel %vm687, %v748, %v749
    %v751 = vrot.slane %v168, 2
    %v752 = vsel %vm687, %v749, %v751
    %v753 = vrot.slane %v169, 2
    %v754 = vrot.slane %v170, 2
    %v755 = vsel %vm687, %v753, %v754
    %v756 = vrot.slane %v171, 2
    %v757 = vsel %vm687, %v754, %v756
    %v758 = vrot.slane %v172, 2
    %v759 = vrot.slane %v173, 2
    %v760 = vsel %vm687, %v758, %v759
    %v761 = vrot.slane %v174, 2
    %v762 = vsel %vm687, %v759, %v761
    %v763 = vrot.slane %v175, 2
    %v764 = vrot.slane %v176, 2
    %v765 = vsel %vm687, %v763, %v764
    %v766 = vrot.slane %v177, 2
    %v767 = vsel %vm687, %v764, %v766
    %v768 = vrot.slane %v184, 2
    %v769 = vrot.slane %v185, 2
    %v770 = vsel %vm687, %v768, %v769
    %v771 = vrot.slane %v186, 2
    %v772 = vsel %vm687, %v769, %v771
    %v773 = vrot.slane %v187, 2
    %v774 = vrot.slane %v188, 2
    %v775 = vsel %vm687, %v773, %v774
    %v776 = vrot.slane %v189, 2
    %v777 = vsel %vm687, %v774, %v776
    %v778 = vrot.slane %v190, 2
    %v779 = vrot.slane %v191, 2
    %v780 = vsel %vm687, %v778, %v779
    %v781 = vrot.slane %v192, 2
    %v782 = vsel %vm687, %v779, %v781
    %v783 = vrot.slane %v193, 2
    %v784 = vrot.slane %v194, 2
    %v785 = vsel %vm687, %v783, %v784
    %v786 = vrot.slane %v195, 2
    %v787 = vsel %vm687, %v784, %v786
    %v788 = vrot.slane %v196, 2
    %v789 = vrot.slane %v197, 2
    %v790 = vsel %vm687, %v788, %v789
    %v791 = vrot.slane %v198, 2
    %v792 = vsel %vm687, %v789, %v791
    %v793 = vrot.slane %v199, 2
    %v794 = vrot.slane %v200, 2
    %v795 = vsel %vm687, %v793, %v794
    %v796 = vrot.slane %v201, 2
    %v797 = vsel %vm687, %v794, %v796
    %v798 = vrot.slane %v202, 2
    %v799 = vrot.slane %v203, 2
    %v800 = vsel %vm687, %v798, %v799
    %v801 = vrot.slane %v204, 2
    %v802 = vsel %vm687, %v799, %v801
    %v803 = vrot.slane %v205, 2
    %v804 = vrot.slane %v206, 2
    %v805 = vsel %vm687, %v803, %v804
    %v806 = vrot.slane %v207, 2
    %v807 = vsel %vm687, %v804, %v806
    %v808 = vrot.slane %v208, 2
    %v809 = vrot.slane %v209, 2
    %v810 = vsel %vm687, %v808, %v809
    %v811 = vrot.slane %v210, 2
    %v812 = vsel %vm687, %v809, %v811
    %v813 = vrot.slane %v211, 2
    %v814 = vrot.slane %v212, 2
    %v815 = vsel %vm687, %v813, %v814
    %v816 = vrot.slane %v213, 2
    %v817 = vsel %vm687, %v814, %v816
    %v818 = vrot.slane %v214, 2
    %v819 = vrot.slane %v215, 2
    %v820 = vsel %vm687, %v818, %v819
    %v821 = vrot.slane %v216, 2
    %v822 = vsel %vm687, %v819, %v821
    %v823 = vrot.slane %v217, 2
    %v824 = vrot.slane %v218, 2
    %v825 = vsel %vm687, %v823, %v824
    %v826 = vrot.slane %v219, 2
    %v827 = vsel %vm687, %v824, %v826
    %v828 = vrot.slane %v220, 2
    %v829 = vrot.slane %v221, 2
    %v830 = vsel %vm687, %v828, %v829
    %v831 = vrot.slane %v222, 2
    %v832 = vsel %vm687, %v829, %v831
    %v833 = vrot.slane %v223, 2
    %v834 = vrot.slane %v224, 2
    %v835 = vsel %vm687, %v833, %v834
    %v836 = vrot.slane %v225, 2
    %v837 = vsel %vm687, %v834, %v836
    %v838 = vrot.slane %v226, 2
    %v839 = vrot.slane %v227, 2
    %v840 = vsel %vm687, %v838, %v839
    %v841 = vrot.slane %v228, 2
    %v842 = vsel %vm687, %v839, %v841
    %v843 = vrot.slane %v229, 2
    %v844 = vrot.slane %v230, 2
    %v845 = vsel %vm687, %v843, %v844
    %v846 = vrot.slane %v231, 2
    %v847 = vsel %vm687, %v844, %v846
    %848 = vrot.lane.b32.xlu0 %v690, 8
    %v849 = vpop.permute.xlu0 %848
    %850 = vrot.lane.b32.xlu0 %v692, 8
    %v851 = vpop.permute.xlu0 %850
    %852 = vrot.lane.b32.xlu0 %v695, 8
    %v853 = vpop.permute.xlu0 %852
    %854 = vrot.lane.b32.xlu0 %v697, 8
    %v855 = vpop.permute.xlu0 %854
    %856 = vrot.lane.b32.xlu0 %v700, 8
    %v857 = vpop.permute.xlu0 %856
    %858 = vrot.lane.b32.xlu0 %v702, 8
    %v859 = vpop.permute.xlu0 %858
    %860 = vrot.lane.b32.xlu0 %v705, 8
    %v861 = vpop.permute.xlu0 %860
    %862 = vrot.lane.b32.xlu0 %v707, 8
    %v863 = vpop.permute.xlu0 %862
    %864 = vrot.lane.b32.xlu0 %v710, 8
    %v865 = vpop.permute.xlu0 %864
    %866 = vrot.lane.b32.xlu0 %v712, 8
    %v867 = vpop.permute.xlu0 %866
    %868 = vrot.lane.b32.xlu0 %v715, 8
    %v869 = vpop.permute.xlu0 %868
    %870 = vrot.lane.b32.xlu0 %v717, 8
    %v871 = vpop.permute.xlu0 %870
    %872 = vrot.lane.b32.xlu0 %v720, 8
    %v873 = vpop.permute.xlu0 %872
    %874 = vrot.lane.b32.xlu0 %v722, 8
    %v875 = vpop.permute.xlu0 %874
    %876 = vrot.lane.b32.xlu0 %v725, 8
    %v877 = vpop.permute.xlu0 %876
    %878 = vrot.lane.b32.xlu0 %v727, 8
    %v879 = vpop.permute.xlu0 %878
    %880 = vrot.lane.b32.xlu0 %v730, 8
    %v881 = vpop.permute.xlu0 %880
    %882 = vrot.lane.b32.xlu0 %v732, 8
    %v883 = vpop.permute.xlu0 %882
    %884 = vrot.lane.b32.xlu0 %v735, 8
    %v885 = vpop.permute.xlu0 %884
    %886 = vrot.lane.b32.xlu0 %v737, 8
    %v887 = vpop.permute.xlu0 %886
    %888 = vrot.lane.b32.xlu0 %v740, 8
    %v889 = vpop.permute.xlu0 %888
    %890 = vrot.lane.b32.xlu0 %v742, 8
    %v891 = vpop.permute.xlu0 %890
    %892 = vrot.lane.b32.xlu0 %v745, 8
    %v893 = vpop.permute.xlu0 %892
    %894 = vrot.lane.b32.xlu0 %v747, 8
    %v895 = vpop.permute.xlu0 %894
    %896 = vrot.lane.b32.xlu0 %v750, 8
    %v897 = vpop.permute.xlu0 %896
    %898 = vrot.lane.b32.xlu0 %v752, 8
    %v899 = vpop.permute.xlu0 %898
    %900 = vrot.lane.b32.xlu0 %v755, 8
    %v901 = vpop.permute.xlu0 %900
    %902 = vrot.lane.b32.xlu0 %v757, 8
    %v903 = vpop.permute.xlu0 %902
    %904 = vrot.lane.b32.xlu0 %v760, 8
    %v905 = vpop.permute.xlu0 %904
    %906 = vrot.lane.b32.xlu0 %v762, 8
    %v907 = vpop.permute.xlu0 %906
    %908 = vrot.lane.b32.xlu0 %v765, 8
    %v909 = vpop.permute.xlu0 %908
    %910 = vrot.lane.b32.xlu0 %v767, 8
    %v911 = vpop.permute.xlu0 %910
    %912 = vrot.lane.b32.xlu0 %v770, 8
    %v913 = vpop.permute.xlu0 %912
    %914 = vrot.lane.b32.xlu0 %v772, 8
    %v915 = vpop.permute.xlu0 %914
    %916 = vrot.lane.b32.xlu0 %v775, 8
    %v917 = vpop.permute.xlu0 %916
    %918 = vrot.lane.b32.xlu0 %v777, 8
    %v919 = vpop.permute.xlu0 %918
    %920 = vrot.lane.b32.xlu0 %v780, 8
    %v921 = vpop.permute.xlu0 %920
    %922 = vrot.lane.b32.xlu0 %v782, 8
    %v923 = vpop.permute.xlu0 %922
    %924 = vrot.lane.b32.xlu0 %v785, 8
    %v925 = vpop.permute.xlu0 %924
    %926 = vrot.lane.b32.xlu0 %v787, 8
    %v927 = vpop.permute.xlu0 %926
    %928 = vrot.lane.b32.xlu0 %v790, 8
    %v929 = vpop.permute.xlu0 %928
    %930 = vrot.lane.b32.xlu0 %v792, 8
    %v931 = vpop.permute.xlu0 %930
    %932 = vrot.lane.b32.xlu0 %v795, 8
    %v933 = vpop.permute.xlu0 %932
    %934 = vrot.lane.b32.xlu0 %v797, 8
    %v935 = vpop.permute.xlu0 %934
    %936 = vrot.lane.b32.xlu0 %v800, 8
    %v937 = vpop.permute.xlu0 %936
    %938 = vrot.lane.b32.xlu0 %v802, 8
    %v939 = vpop.permute.xlu0 %938
    %940 = vrot.lane.b32.xlu0 %v805, 8
    %v941 = vpop.permute.xlu0 %940
    %942 = vrot.lane.b32.xlu0 %v807, 8
    %v943 = vpop.permute.xlu0 %942
    %944 = vrot.lane.b32.xlu0 %v810, 8
    %v945 = vpop.permute.xlu0 %944
    %946 = vrot.lane.b32.xlu0 %v812, 8
    %v947 = vpop.permute.xlu0 %946
    %948 = vrot.lane.b32.xlu0 %v815, 8
    %v949 = vpop.permute.xlu0 %948
    %950 = vrot.lane.b32.xlu0 %v817, 8
    %v951 = vpop.permute.xlu0 %950
    %952 = vrot.lane.b32.xlu0 %v820, 8
    %v953 = vpop.permute.xlu0 %952
    %954 = vrot.lane.b32.xlu0 %v822, 8
    %v955 = vpop.permute.xlu0 %954
    %956 = vrot.lane.b32.xlu0 %v825, 8
    %v957 = vpop.permute.xlu0 %956
    %958 = vrot.lane.b32.xlu0 %v827, 8
    %v959 = vpop.permute.xlu0 %958
    %960 = vrot.lane.b32.xlu0 %v830, 8
    %v961 = vpop.permute.xlu0 %960
    %962 = vrot.lane.b32.xlu0 %v832, 8
    %v963 = vpop.permute.xlu0 %962
    %964 = vrot.lane.b32.xlu0 %v835, 8
    %v965 = vpop.permute.xlu0 %964
    %966 = vrot.lane.b32.xlu0 %v837, 8
    %v967 = vpop.permute.xlu0 %966
    %968 = vrot.lane.b32.xlu0 %v840, 8
    %v969 = vpop.permute.xlu0 %968
    %970 = vrot.lane.b32.xlu0 %v842, 8
    %v971 = vpop.permute.xlu0 %970
    %972 = vrot.lane.b32.xlu0 %v845, 8
    %v973 = vpop.permute.xlu0 %972
    %974 = vrot.lane.b32.xlu0 %v847, 8
    %v975 = vpop.permute.xlu0 %974
    %1044 = vrot.lane.b32.xlu0 %v133, 12
    %v1045 = vpop.permute.xlu0 %1044
    %1046 = vrot.lane.b32.xlu0 %v134, 12
    %v1047 = vpop.permute.xlu0 %1046
    %1048 = vrot.lane.b32.xlu0 %v136, 12
    %v1049 = vpop.permute.xlu0 %1048
    %1050 = vrot.lane.b32.xlu0 %v137, 12
    %v1051 = vpop.permute.xlu0 %1050
    %1052 = vrot.lane.b32.xlu0 %v139, 12
    %v1053 = vpop.permute.xlu0 %1052
    %1054 = vrot.lane.b32.xlu0 %v140, 12
    %v1055 = vpop.permute.xlu0 %1054
    %1056 = vrot.lane.b32.xlu0 %v142, 12
    %v1057 = vpop.permute.xlu0 %1056
    %1058 = vrot.lane.b32.xlu0 %v143, 12
    %v1059 = vpop.permute.xlu0 %1058
    %1060 = vrot.lane.b32.xlu0 %v145, 12
    %v1061 = vpop.permute.xlu0 %1060
    %1062 = vrot.lane.b32.xlu0 %v146, 12
    %v1063 = vpop.permute.xlu0 %1062
    %1064 = vrot.lane.b32.xlu0 %v148, 12
    %v1065 = vpop.permute.xlu0 %1064
    %1066 = vrot.lane.b32.xlu0 %v149, 12
    %v1067 = vpop.permute.xlu0 %1066
    %1068 = vrot.lane.b32.xlu0 %v151, 12
    %v1069 = vpop.permute.xlu0 %1068
    %1070 = vrot.lane.b32.xlu0 %v152, 12
    %v1071 = vpop.permute.xlu0 %1070
    %1072 = vrot.lane.b32.xlu0 %v154, 12
    %v1073 = vpop.permute.xlu0 %1072
    %1074 = vrot.lane.b32.xlu0 %v155, 12
    %v1075 = vpop.permute.xlu0 %1074
    %1076 = vrot.lane.b32.xlu0 %v157, 12
    %v1077 = vpop.permute.xlu0 %1076
    %1078 = vrot.lane.b32.xlu0 %v158, 12
    %v1079 = vpop.permute.xlu0 %1078
    %1080 = vrot.lane.b32.xlu0 %v160, 12
    %v1081 = vpop.permute.xlu0 %1080
    %1082 = vrot.lane.b32.xlu0 %v161, 12
    %v1083 = vpop.permute.xlu0 %1082
    %1084 = vrot.lane.b32.xlu0 %v163, 12
    %v1085 = vpop.permute.xlu0 %1084
    %1086 = vrot.lane.b32.xlu0 %v164, 12
    %v1087 = vpop.permute.xlu0 %1086
    %1088 = vrot.lane.b32.xlu0 %v166, 12
    %v1089 = vpop.permute.xlu0 %1088
    %1090 = vrot.lane.b32.xlu0 %v167, 12
    %v1091 = vpop.permute.xlu0 %1090
    %1092 = vrot.lane.b32.xlu0 %v169, 12
    %v1093 = vpop.permute.xlu0 %1092
    %1094 = vrot.lane.b32.xlu0 %v170, 12
    %v1095 = vpop.permute.xlu0 %1094
    %1096 = vrot.lane.b32.xlu0 %v172, 12
    %v1097 = vpop.permute.xlu0 %1096
    %1098 = vrot.lane.b32.xlu0 %v173, 12
    %v1099 = vpop.permute.xlu0 %1098
    %1100 = vrot.lane.b32.xlu0 %v175, 12
    %v1101 = vpop.permute.xlu0 %1100
    %1102 = vrot.lane.b32.xlu0 %v176, 12
    %v1103 = vpop.permute.xlu0 %1102
    %1104 = vrot.lane.b32.xlu0 %v178, 12
    %v1105 = vpop.permute.xlu0 %1104
    %1106 = vrot.lane.b32.xlu0 %v179, 12
    %v1107 = vpop.permute.xlu0 %1106
    %1108 = vrot.lane.b32.xlu0 %v187, 12
    %v1109 = vpop.permute.xlu0 %1108
    %1110 = vrot.lane.b32.xlu0 %v188, 12
    %v1111 = vpop.permute.xlu0 %1110
    %1112 = vrot.lane.b32.xlu0 %v190, 12
    %v1113 = vpop.permute.xlu0 %1112
    %1114 = vrot.lane.b32.xlu0 %v191, 12
    %v1115 = vpop.permute.xlu0 %1114
    %1116 = vrot.lane.b32.xlu0 %v193, 12
    %v1117 = vpop.permute.xlu0 %1116
    %1118 = vrot.lane.b32.xlu0 %v194, 12
    %v1119 = vpop.permute.xlu0 %1118
    %1120 = vrot.lane.b32.xlu0 %v196, 12
    %v1121 = vpop.permute.xlu0 %1120
    %1122 = vrot.lane.b32.xlu0 %v197, 12
    %v1123 = vpop.permute.xlu0 %1122
    %1124 = vrot.lane.b32.xlu0 %v199, 12
    %v1125 = vpop.permute.xlu0 %1124
    %1126 = vrot.lane.b32.xlu0 %v200, 12
    %v1127 = vpop.permute.xlu0 %1126
    %1128 = vrot.lane.b32.xlu0 %v202, 12
    %v1129 = vpop.permute.xlu0 %1128
    %1130 = vrot.lane.b32.xlu0 %v203, 12
    %v1131 = vpop.permute.xlu0 %1130
    %1132 = vrot.lane.b32.xlu0 %v205, 12
    %v1133 = vpop.permute.xlu0 %1132
    %1134 = vrot.lane.b32.xlu0 %v206, 12
    %v1135 = vpop.permute.xlu0 %1134
    %1136 = vrot.lane.b32.xlu0 %v208, 12
    %v1137 = vpop.permute.xlu0 %1136
    %1138 = vrot.lane.b32.xlu0 %v209, 12
    %v1139 = vpop.permute.xlu0 %1138
    %1140 = vrot.lane.b32.xlu0 %v211, 12
    %v1141 = vpop.permute.xlu0 %1140
    %1142 = vrot.lane.b32.xlu0 %v212, 12
    %v1143 = vpop.permute.xlu0 %1142
    %1144 = vrot.lane.b32.xlu0 %v214, 12
    %v1145 = vpop.permute.xlu0 %1144
    %1146 = vrot.lane.b32.xlu0 %v215, 12
    %v1147 = vpop.permute.xlu0 %1146
    %1148 = vrot.lane.b32.xlu0 %v217, 12
    %v1149 = vpop.permute.xlu0 %1148
    %1150 = vrot.lane.b32.xlu0 %v218, 12
    %v1151 = vpop.permute.xlu0 %1150
    %1152 = vrot.lane.b32.xlu0 %v220, 12
    %v1153 = vpop.permute.xlu0 %1152
    %1154 = vrot.lane.b32.xlu0 %v221, 12
    %v1155 = vpop.permute.xlu0 %1154
    %1156 = vrot.lane.b32.xlu0 %v223, 12
    %v1157 = vpop.permute.xlu0 %1156
    %1158 = vrot.lane.b32.xlu0 %v224, 12
    %v1159 = vpop.permute.xlu0 %1158
    %1160 = vrot.lane.b32.xlu0 %v226, 12
    %v1161 = vpop.permute.xlu0 %1160
    %1162 = vrot.lane.b32.xlu0 %v227, 12
    %v1163 = vpop.permute.xlu0 %1162
    %1164 = vrot.lane.b32.xlu0 %v229, 12
    %v1165 = vpop.permute.xlu0 %1164
    %1166 = vrot.lane.b32.xlu0 %v230, 12
    %v1167 = vpop.permute.xlu0 %1166
    %1168 = vrot.lane.b32.xlu0 %v232, 12
    %v1169 = vpop.permute.xlu0 %1168
    %1170 = vrot.lane.b32.xlu0 %v233, 12
    %v1171 = vpop.permute.xlu0 %1170
    %v1238 = vrot.slane %v178, 1
    %v1239 = vrot.slane %v179, 1
    %v1240 = vsel %vm334, %v1238, %v1239
    %v1241 = vrot.slane %v180, 1
    %v1242 = vsel %vm334, %v1239, %v1241
    %v1243 = vrot.slane %v232, 1
    %v1244 = vrot.slane %v233, 1
    %v1245 = vsel %vm334, %v1243, %v1244
    %v1246 = vrot.slane %v234, 1
    %v1247 = vsel %vm334, %v1244, %v1246
    %1248 = vrot.lane.b32.xlu0 %v342, 16
    %v1249 = vpop.permute.xlu0 %1248
    %1250 = vrot.lane.b32.xlu0 %v344, 16
    %v1251 = vpop.permute.xlu0 %1250
    %1252 = vrot.lane.b32.xlu0 %v347, 16
    %v1253 = vpop.permute.xlu0 %1252
    %1254 = vrot.lane.b32.xlu0 %v349, 16
    %v1255 = vpop.permute.xlu0 %1254
    %1256 = vrot.lane.b32.xlu0 %v352, 16
    %v1257 = vpop.permute.xlu0 %1256
    %1258 = vrot.lane.b32.xlu0 %v354, 16
    %v1259 = vpop.permute.xlu0 %1258
    %1260 = vrot.lane.b32.xlu0 %v357, 16
    %v1261 = vpop.permute.xlu0 %1260
    %1262 = vrot.lane.b32.xlu0 %v359, 16
    %v1263 = vpop.permute.xlu0 %1262
    %1264 = vrot.lane.b32.xlu0 %v362, 16
    %v1265 = vpop.permute.xlu0 %1264
    %1266 = vrot.lane.b32.xlu0 %v364, 16
    %v1267 = vpop.permute.xlu0 %1266
    %1268 = vrot.lane.b32.xlu0 %v367, 16
    %v1269 = vpop.permute.xlu0 %1268
    %1270 = vrot.lane.b32.xlu0 %v369, 16
    %v1271 = vpop.permute.xlu0 %1270
    %1272 = vrot.lane.b32.xlu0 %v372, 16
    %v1273 = vpop.permute.xlu0 %1272
    %1274 = vrot.lane.b32.xlu0 %v374, 16
    %v1275 = vpop.permute.xlu0 %1274
    %1276 = vrot.lane.b32.xlu0 %v377, 16
    %v1277 = vpop.permute.xlu0 %1276
    %1278 = vrot.lane.b32.xlu0 %v379, 16
    %v1279 = vpop.permute.xlu0 %1278
    %1280 = vrot.lane.b32.xlu0 %v382, 16
    %v1281 = vpop.permute.xlu0 %1280
    %1282 = vrot.lane.b32.xlu0 %v384, 16
    %v1283 = vpop.permute.xlu0 %1282
    %1284 = vrot.lane.b32.xlu0 %v387, 16
    %v1285 = vpop.permute.xlu0 %1284
    %1286 = vrot.lane.b32.xlu0 %v389, 16
    %v1287 = vpop.permute.xlu0 %1286
    %1288 = vrot.lane.b32.xlu0 %v392, 16
    %v1289 = vpop.permute.xlu0 %1288
    %1290 = vrot.lane.b32.xlu0 %v394, 16
    %v1291 = vpop.permute.xlu0 %1290
    %1292 = vrot.lane.b32.xlu0 %v397, 16
    %v1293 = vpop.permute.xlu0 %1292
    %1294 = vrot.lane.b32.xlu0 %v399, 16
    %v1295 = vpop.permute.xlu0 %1294
    %1296 = vrot.lane.b32.xlu0 %v402, 16
    %v1297 = vpop.permute.xlu0 %1296
    %1298 = vrot.lane.b32.xlu0 %v404, 16
    %v1299 = vpop.permute.xlu0 %1298
    %1300 = vrot.lane.b32.xlu0 %v407, 16
    %v1301 = vpop.permute.xlu0 %1300
    %1302 = vrot.lane.b32.xlu0 %v409, 16
    %v1303 = vpop.permute.xlu0 %1302
    %1304 = vrot.lane.b32.xlu0 %v412, 16
    %v1305 = vpop.permute.xlu0 %1304
    %1306 = vrot.lane.b32.xlu0 %v414, 16
    %v1307 = vpop.permute.xlu0 %1306
    %1308 = vrot.lane.b32.xlu0 %v1240, 16
    %v1309 = vpop.permute.xlu0 %1308
    %1310 = vrot.lane.b32.xlu0 %v1242, 16
    %v1311 = vpop.permute.xlu0 %1310
    %1312 = vrot.lane.b32.xlu0 %v422, 16
    %v1313 = vpop.permute.xlu0 %1312
    %1314 = vrot.lane.b32.xlu0 %v424, 16
    %v1315 = vpop.permute.xlu0 %1314
    %1316 = vrot.lane.b32.xlu0 %v427, 16
    %v1317 = vpop.permute.xlu0 %1316
    %1318 = vrot.lane.b32.xlu0 %v429, 16
    %v1319 = vpop.permute.xlu0 %1318
    %1320 = vrot.lane.b32.xlu0 %v432, 16
    %v1321 = vpop.permute.xlu0 %1320
    %1322 = vrot.lane.b32.xlu0 %v434, 16
    %v1323 = vpop.permute.xlu0 %1322
    %1324 = vrot.lane.b32.xlu0 %v437, 16
    %v1325 = vpop.permute.xlu0 %1324
    %1326 = vrot.lane.b32.xlu0 %v439, 16
    %v1327 = vpop.permute.xlu0 %1326
    %1328 = vrot.lane.b32.xlu0 %v442, 16
    %v1329 = vpop.permute.xlu0 %1328
    %1330 = vrot.lane.b32.xlu0 %v444, 16
    %v1331 = vpop.permute.xlu0 %1330
    %1332 = vrot.lane.b32.xlu0 %v447, 16
    %v1333 = vpop.permute.xlu0 %1332
    %1334 = vrot.lane.b32.xlu0 %v449, 16
    %v1335 = vpop.permute.xlu0 %1334
    %1336 = vrot.lane.b32.xlu0 %v452, 16
    %v1337 = vpop.permute.xlu0 %1336
    %1338 = vrot.lane.b32.xlu0 %v454, 16
    %v1339 = vpop.permute.xlu0 %1338
    %1340 = vrot.lane.b32.xlu0 %v457, 16
    %v1341 = vpop.permute.xlu0 %1340
    %1342 = vrot.lane.b32.xlu0 %v459, 16
    %v1343 = vpop.permute.xlu0 %1342
    %1344 = vrot.lane.b32.xlu0 %v462, 16
    %v1345 = vpop.permute.xlu0 %1344
    %1346 = vrot.lane.b32.xlu0 %v464, 16
    %v1347 = vpop.permute.xlu0 %1346
    %1348 = vrot.lane.b32.xlu0 %v467, 16
    %v1349 = vpop.permute.xlu0 %1348
    %1350 = vrot.lane.b32.xlu0 %v469, 16
    %v1351 = vpop.permute.xlu0 %1350
    %1352 = vrot.lane.b32.xlu0 %v472, 16
    %v1353 = vpop.permute.xlu0 %1352
    %1354 = vrot.lane.b32.xlu0 %v474, 16
    %v1355 = vpop.permute.xlu0 %1354
    %1356 = vrot.lane.b32.xlu0 %v477, 16
    %v1357 = vpop.permute.xlu0 %1356
    %1358 = vrot.lane.b32.xlu0 %v479, 16
    %v1359 = vpop.permute.xlu0 %1358
    %1360 = vrot.lane.b32.xlu0 %v482, 16
    %v1361 = vpop.permute.xlu0 %1360
    %1362 = vrot.lane.b32.xlu0 %v484, 16
    %v1363 = vpop.permute.xlu0 %1362
    %1364 = vrot.lane.b32.xlu0 %v487, 16
    %v1365 = vpop.permute.xlu0 %1364
    %1366 = vrot.lane.b32.xlu0 %v489, 16
    %v1367 = vpop.permute.xlu0 %1366
    %1368 = vrot.lane.b32.xlu0 %v492, 16
    %v1369 = vpop.permute.xlu0 %1368
    %1370 = vrot.lane.b32.xlu0 %v494, 16
    %v1371 = vpop.permute.xlu0 %1370
    %1372 = vrot.lane.b32.xlu0 %v1245, 16
    %v1373 = vpop.permute.xlu0 %1372
    %1374 = vrot.lane.b32.xlu0 %v1247, 16
    %v1375 = vpop.permute.xlu0 %1374
    %v1440 = vrot.slane %v178, 2
    %v1441 = vrot.slane %v179, 2
    %v1442 = vsel %vm687, %v1440, %v1441
    %v1443 = vrot.slane %v180, 2
    %v1444 = vsel %vm687, %v1441, %v1443
    %v1445 = vrot.slane %v232, 2
    %v1446 = vrot.slane %v233, 2
    %v1447 = vsel %vm687, %v1445, %v1446
    %v1448 = vrot.slane %v234, 2
    %v1449 = vsel %vm687, %v1446, %v1448
    %1450 = vrot.lane.b32.xlu0 %v695, 20
    %v1451 = vpop.permute.xlu0 %1450
    %1452 = vrot.lane.b32.xlu0 %v697, 20
    %v1453 = vpop.permute.xlu0 %1452
    %1454 = vrot.lane.b32.xlu0 %v700, 20
    %v1455 = vpop.permute.xlu0 %1454
    %1456 = vrot.lane.b32.xlu0 %v702, 20
    %v1457 = vpop.permute.xlu0 %1456
    %1458 = vrot.lane.b32.xlu0 %v705, 20
    %v1459 = vpop.permute.xlu0 %1458
    %1460 = vrot.lane.b32.xlu0 %v707, 20
    %v1461 = vpop.permute.xlu0 %1460
    %1462 = vrot.lane.b32.xlu0 %v710, 20
    %v1463 = vpop.permute.xlu0 %1462
    %1464 = vrot.lane.b32.xlu0 %v712, 20
    %v1465 = vpop.permute.xlu0 %1464
    %1466 = vrot.lane.b32.xlu0 %v715, 20
    %v1467 = vpop.permute.xlu0 %1466
    %1468 = vrot.lane.b32.xlu0 %v717, 20
    %v1469 = vpop.permute.xlu0 %1468
    %1470 = vrot.lane.b32.xlu0 %v720, 20
    %v1471 = vpop.permute.xlu0 %1470
    %1472 = vrot.lane.b32.xlu0 %v722, 20
    %v1473 = vpop.permute.xlu0 %1472
    %1474 = vrot.lane.b32.xlu0 %v725, 20
    %v1475 = vpop.permute.xlu0 %1474
    %1476 = vrot.lane.b32.xlu0 %v727, 20
    %v1477 = vpop.permute.xlu0 %1476
    %1478 = vrot.lane.b32.xlu0 %v730, 20
    %v1479 = vpop.permute.xlu0 %1478
    %1480 = vrot.lane.b32.xlu0 %v732, 20
    %v1481 = vpop.permute.xlu0 %1480
    %1482 = vrot.lane.b32.xlu0 %v735, 20
    %v1483 = vpop.permute.xlu0 %1482
    %1484 = vrot.lane.b32.xlu0 %v737, 20
    %v1485 = vpop.permute.xlu0 %1484
    %1486 = vrot.lane.b32.xlu0 %v740, 20
    %v1487 = vpop.permute.xlu0 %1486
    %1488 = vrot.lane.b32.xlu0 %v742, 20
    %v1489 = vpop.permute.xlu0 %1488
    %1490 = vrot.lane.b32.xlu0 %v745, 20
    %v1491 = vpop.permute.xlu0 %1490
    %1492 = vrot.lane.b32.xlu0 %v747, 20
    %v1493 = vpop.permute.xlu0 %1492
    %1494 = vrot.lane.b32.xlu0 %v750, 20
    %v1495 = vpop.permute.xlu0 %1494
    %1496 = vrot.lane.b32.xlu0 %v752, 20
    %v1497 = vpop.permute.xlu0 %1496
    %1498 = vrot.lane.b32.xlu0 %v755, 20
    %v1499 = vpop.permute.xlu0 %1498
    %1500 = vrot.lane.b32.xlu0 %v757, 20
    %v1501 = vpop.permute.xlu0 %1500
    %1502 = vrot.lane.b32.xlu0 %v760, 20
    %v1503 = vpop.permute.xlu0 %1502
    %1504 = vrot.lane.b32.xlu0 %v762, 20
    %v1505 = vpop.permute.xlu0 %1504
    %1506 = vrot.lane.b32.xlu0 %v765, 20
    %v1507 = vpop.permute.xlu0 %1506
    %1508 = vrot.lane.b32.xlu0 %v767, 20
    %v1509 = vpop.permute.xlu0 %1508
    %1510 = vrot.lane.b32.xlu0 %v1442, 20
    %v1511 = vpop.permute.xlu0 %1510
    %1512 = vrot.lane.b32.xlu0 %v1444, 20
    %v1513 = vpop.permute.xlu0 %1512
    %1514 = vrot.lane.b32.xlu0 %v775, 20
    %v1515 = vpop.permute.xlu0 %1514
    %1516 = vrot.lane.b32.xlu0 %v777, 20
    %v1517 = vpop.permute.xlu0 %1516
    %1518 = vrot.lane.b32.xlu0 %v780, 20
    %v1519 = vpop.permute.xlu0 %1518
    %1520 = vrot.lane.b32.xlu0 %v782, 20
    %v1521 = vpop.permute.xlu0 %1520
    %1522 = vrot.lane.b32.xlu0 %v785, 20
    %v1523 = vpop.permute.xlu0 %1522
    %1524 = vrot.lane.b32.xlu0 %v787, 20
    %v1525 = vpop.permute.xlu0 %1524
    %1526 = vrot.lane.b32.xlu0 %v790, 20
    %v1527 = vpop.permute.xlu0 %1526
    %1528 = vrot.lane.b32.xlu0 %v792, 20
    %v1529 = vpop.permute.xlu0 %1528
    %1530 = vrot.lane.b32.xlu0 %v795, 20
    %v1531 = vpop.permute.xlu0 %1530
    %1532 = vrot.lane.b32.xlu0 %v797, 20
    %v1533 = vpop.permute.xlu0 %1532
    %1534 = vrot.lane.b32.xlu0 %v800, 20
    %v1535 = vpop.permute.xlu0 %1534
    %1536 = vrot.lane.b32.xlu0 %v802, 20
    %v1537 = vpop.permute.xlu0 %1536
    %1538 = vrot.lane.b32.xlu0 %v805, 20
    %v1539 = vpop.permute.xlu0 %1538
    %1540 = vrot.lane.b32.xlu0 %v807, 20
    %v1541 = vpop.permute.xlu0 %1540
    %1542 = vrot.lane.b32.xlu0 %v810, 20
    %v1543 = vpop.permute.xlu0 %1542
    %1544 = vrot.lane.b32.xlu0 %v812, 20
    %v1545 = vpop.permute.xlu0 %1544
    %1546 = vrot.lane.b32.xlu0 %v815, 20
    %v1547 = vpop.permute.xlu0 %1546
    %1548 = vrot.lane.b32.xlu0 %v817, 20
    %v1549 = vpop.permute.xlu0 %1548
    %1550 = vrot.lane.b32.xlu0 %v820, 20
    %v1551 = vpop.permute.xlu0 %1550
    %1552 = vrot.lane.b32.xlu0 %v822, 20
    %v1553 = vpop.permute.xlu0 %1552
    %1554 = vrot.lane.b32.xlu0 %v825, 20
    %v1555 = vpop.permute.xlu0 %1554
    %1556 = vrot.lane.b32.xlu0 %v827, 20
    %v1557 = vpop.permute.xlu0 %1556
    %1558 = vrot.lane.b32.xlu0 %v830, 20
    %v1559 = vpop.permute.xlu0 %1558
    %1560 = vrot.lane.b32.xlu0 %v832, 20
    %v1561 = vpop.permute.xlu0 %1560
    %1562 = vrot.lane.b32.xlu0 %v835, 20
    %v1563 = vpop.permute.xlu0 %1562
    %1564 = vrot.lane.b32.xlu0 %v837, 20
    %v1565 = vpop.permute.xlu0 %1564
    %1566 = vrot.lane.b32.xlu0 %v840, 20
    %v1567 = vpop.permute.xlu0 %1566
    %1568 = vrot.lane.b32.xlu0 %v842, 20
    %v1569 = vpop.permute.xlu0 %1568
    %1570 = vrot.lane.b32.xlu0 %v845, 20
    %v1571 = vpop.permute.xlu0 %1570
    %1572 = vrot.lane.b32.xlu0 %v847, 20
    %v1573 = vpop.permute.xlu0 %1572
    %1574 = vrot.lane.b32.xlu0 %v1447, 20
    %v1575 = vpop.permute.xlu0 %1574
    %1576 = vrot.lane.b32.xlu0 %v1449, 20
    %v1577 = vpop.permute.xlu0 %1576
    %1646 = vrot.lane.b32.xlu0 %v136, 24
    %v1647 = vpop.permute.xlu0 %1646
    %1648 = vrot.lane.b32.xlu0 %v137, 24
    %v1649 = vpop.permute.xlu0 %1648
    %1650 = vrot.lane.b32.xlu0 %v139, 24
    %v1651 = vpop.permute.xlu0 %1650
    %1652 = vrot.lane.b32.xlu0 %v140, 24
    %v1653 = vpop.permute.xlu0 %1652
    %1654 = vrot.lane.b32.xlu0 %v142, 24
    %v1655 = vpop.permute.xlu0 %1654
    %1656 = vrot.lane.b32.xlu0 %v143, 24
    %v1657 = vpop.permute.xlu0 %1656
    %1658 = vrot.lane.b32.xlu0 %v145, 24
    %v1659 = vpop.permute.xlu0 %1658
    %1660 = vrot.lane.b32.xlu0 %v146, 24
    %v1661 = vpop.permute.xlu0 %1660
    %1662 = vrot.lane.b32.xlu0 %v148, 24
    %v1663 = vpop.permute.xlu0 %1662
    %1664 = vrot.lane.b32.xlu0 %v149, 24
    %v1665 = vpop.permute.xlu0 %1664
    %1666 = vrot.lane.b32.xlu0 %v151, 24
    %v1667 = vpop.permute.xlu0 %1666
    %1668 = vrot.lane.b32.xlu0 %v152, 24
    %v1669 = vpop.permute.xlu0 %1668
    %1670 = vrot.lane.b32.xlu0 %v154, 24
    %v1671 = vpop.permute.xlu0 %1670
    %1672 = vrot.lane.b32.xlu0 %v155, 24
    %v1673 = vpop.permute.xlu0 %1672
    %1674 = vrot.lane.b32.xlu0 %v157, 24
    %v1675 = vpop.permute.xlu0 %1674
    %1676 = vrot.lane.b32.xlu0 %v158, 24
    %v1677 = vpop.permute.xlu0 %1676
    %1678 = vrot.lane.b32.xlu0 %v160, 24
    %v1679 = vpop.permute.xlu0 %1678
    %1680 = vrot.lane.b32.xlu0 %v161, 24
    %v1681 = vpop.permute.xlu0 %1680
    %1682 = vrot.lane.b32.xlu0 %v163, 24
    %v1683 = vpop.permute.xlu0 %1682
    %1684 = vrot.lane.b32.xlu0 %v164, 24
    %v1685 = vpop.permute.xlu0 %1684
    %1686 = vrot.lane.b32.xlu0 %v166, 24
    %v1687 = vpop.permute.xlu0 %1686
    %1688 = vrot.lane.b32.xlu0 %v167, 24
    %v1689 = vpop.permute.xlu0 %1688
    %1690 = vrot.lane.b32.xlu0 %v169, 24
    %v1691 = vpop.permute.xlu0 %1690
    %1692 = vrot.lane.b32.xlu0 %v170, 24
    %v1693 = vpop.permute.xlu0 %1692
    %1694 = vrot.lane.b32.xlu0 %v172, 24
    %v1695 = vpop.permute.xlu0 %1694
    %1696 = vrot.lane.b32.xlu0 %v173, 24
    %v1697 = vpop.permute.xlu0 %1696
    %1698 = vrot.lane.b32.xlu0 %v175, 24
    %v1699 = vpop.permute.xlu0 %1698
    %1700 = vrot.lane.b32.xlu0 %v176, 24
    %v1701 = vpop.permute.xlu0 %1700
    %1702 = vrot.lane.b32.xlu0 %v178, 24
    %v1703 = vpop.permute.xlu0 %1702
    %1704 = vrot.lane.b32.xlu0 %v179, 24
    %v1705 = vpop.permute.xlu0 %1704
    %1706 = vrot.lane.b32.xlu0 %v181, 24
    %v1707 = vpop.permute.xlu0 %1706
    %1708 = vrot.lane.b32.xlu0 %v182, 24
    %v1709 = vpop.permute.xlu0 %1708
    %1710 = vrot.lane.b32.xlu0 %v190, 24
    %v1711 = vpop.permute.xlu0 %1710
    %1712 = vrot.lane.b32.xlu0 %v191, 24
    %v1713 = vpop.permute.xlu0 %1712
    %1714 = vrot.lane.b32.xlu0 %v193, 24
    %v1715 = vpop.permute.xlu0 %1714
    %1716 = vrot.lane.b32.xlu0 %v194, 24
    %v1717 = vpop.permute.xlu0 %1716
    %1718 = vrot.lane.b32.xlu0 %v196, 24
    %v1719 = vpop.permute.xlu0 %1718
    %1720 = vrot.lane.b32.xlu0 %v197, 24
    %v1721 = vpop.permute.xlu0 %1720
    %1722 = vrot.lane.b32.xlu0 %v199, 24
    %v1723 = vpop.permute.xlu0 %1722
    %1724 = vrot.lane.b32.xlu0 %v200, 24
    %v1725 = vpop.permute.xlu0 %1724
    %1726 = vrot.lane.b32.xlu0 %v202, 24
    %v1727 = vpop.permute.xlu0 %1726
    %1728 = vrot.lane.b32.xlu0 %v203, 24
    %v1729 = vpop.permute.xlu0 %1728
    %1730 = vrot.lane.b32.xlu0 %v205, 24
    %v1731 = vpop.permute.xlu0 %1730
    %1732 = vrot.lane.b32.xlu0 %v206, 24
    %v1733 = vpop.permute.xlu0 %1732
    %1734 = vrot.lane.b32.xlu0 %v208, 24
    %v1735 = vpop.permute.xlu0 %1734
    %1736 = vrot.lane.b32.xlu0 %v209, 24
    %v1737 = vpop.permute.xlu0 %1736
    %1738 = vrot.lane.b32.xlu0 %v211, 24
    %v1739 = vpop.permute.xlu0 %1738
    %1740 = vrot.lane.b32.xlu0 %v212, 24
    %v1741 = vpop.permute.xlu0 %1740
    %1742 = vrot.lane.b32.xlu0 %v214, 24
    %v1743 = vpop.permute.xlu0 %1742
    %1744 = vrot.lane.b32.xlu0 %v215, 24
    %v1745 = vpop.permute.xlu0 %1744
    %1746 = vrot.lane.b32.xlu0 %v217, 24
    %v1747 = vpop.permute.xlu0 %1746
    %1748 = vrot.lane.b32.xlu0 %v218, 24
    %v1749 = vpop.permute.xlu0 %1748
    %1750 = vrot.lane.b32.xlu0 %v220, 24
    %v1751 = vpop.permute.xlu0 %1750
    %1752 = vrot.lane.b32.xlu0 %v221, 24
    %v1753 = vpop.permute.xlu0 %1752
    %1754 = vrot.lane.b32.xlu0 %v223, 24
    %v1755 = vpop.permute.xlu0 %1754
    %1756 = vrot.lane.b32.xlu0 %v224, 24
    %v1757 = vpop.permute.xlu0 %1756
    %1758 = vrot.lane.b32.xlu0 %v226, 24
    %v1759 = vpop.permute.xlu0 %1758
    %1760 = vrot.lane.b32.xlu0 %v227, 24
    %v1761 = vpop.permute.xlu0 %1760
    %1762 = vrot.lane.b32.xlu0 %v229, 24
    %v1763 = vpop.permute.xlu0 %1762
    %1764 = vrot.lane.b32.xlu0 %v230, 24
    %v1765 = vpop.permute.xlu0 %1764
    %1766 = vrot.lane.b32.xlu0 %v232, 24
    %v1767 = vpop.permute.xlu0 %1766
    %1768 = vrot.lane.b32.xlu0 %v233, 24
    %v1769 = vpop.permute.xlu0 %1768
    %1770 = vrot.lane.b32.xlu0 %v235, 24
    %v1771 = vpop.permute.xlu0 %1770
    %1772 = vrot.lane.b32.xlu0 %v236, 24
    %v1773 = vpop.permute.xlu0 %1772
    %v1840 = vrot.slane %v181, 1
    %v1841 = vrot.slane %v182, 1
    %v1842 = vsel %vm334, %v1840, %v1841
    %v1843 = vrot.slane %v183, 1
    %v1844 = vsel %vm334, %v1841, %v1843
    %v1845 = vrot.slane %v235, 1
    %v1846 = vrot.slane %v236, 1
    %v1847 = vsel %vm334, %v1845, %v1846
    %v1848 = vrot.slane %v237, 1
    %v1849 = vsel %vm334, %v1846, %v1848
    %1850 = vrot.lane.b32.xlu0 %v347, 28
    %v1851 = vpop.permute.xlu0 %1850
    %1852 = vrot.lane.b32.xlu0 %v349, 28
    %v1853 = vpop.permute.xlu0 %1852
    %1854 = vrot.lane.b32.xlu0 %v352, 28
    %v1855 = vpop.permute.xlu0 %1854
    %1856 = vrot.lane.b32.xlu0 %v354, 28
    %v1857 = vpop.permute.xlu0 %1856
    %1858 = vrot.lane.b32.xlu0 %v357, 28
    %v1859 = vpop.permute.xlu0 %1858
    %1860 = vrot.lane.b32.xlu0 %v359, 28
    %v1861 = vpop.permute.xlu0 %1860
    %1862 = vrot.lane.b32.xlu0 %v362, 28
    %v1863 = vpop.permute.xlu0 %1862
    %1864 = vrot.lane.b32.xlu0 %v364, 28
    %v1865 = vpop.permute.xlu0 %1864
    %1866 = vrot.lane.b32.xlu0 %v367, 28
    %v1867 = vpop.permute.xlu0 %1866
    %1868 = vrot.lane.b32.xlu0 %v369, 28
    %v1869 = vpop.permute.xlu0 %1868
    %1870 = vrot.lane.b32.xlu0 %v372, 28
    %v1871 = vpop.permute.xlu0 %1870
    %1872 = vrot.lane.b32.xlu0 %v374, 28
    %v1873 = vpop.permute.xlu0 %1872
    %1874 = vrot.lane.b32.xlu0 %v377, 28
    %v1875 = vpop.permute.xlu0 %1874
    %1876 = vrot.lane.b32.xlu0 %v379, 28
    %v1877 = vpop.permute.xlu0 %1876
    %1878 = vrot.lane.b32.xlu0 %v382, 28
    %v1879 = vpop.permute.xlu0 %1878
    %1880 = vrot.lane.b32.xlu0 %v384, 28
    %v1881 = vpop.permute.xlu0 %1880
    %1882 = vrot.lane.b32.xlu0 %v387, 28
    %v1883 = vpop.permute.xlu0 %1882
    %1884 = vrot.lane.b32.xlu0 %v389, 28
    %v1885 = vpop.permute.xlu0 %1884
    %1886 = vrot.lane.b32.xlu0 %v392, 28
    %v1887 = vpop.permute.xlu0 %1886
    %1888 = vrot.lane.b32.xlu0 %v394, 28
    %v1889 = vpop.permute.xlu0 %1888
    %1890 = vrot.lane.b32.xlu0 %v397, 28
    %v1891 = vpop.permute.xlu0 %1890
    %1892 = vrot.lane.b32.xlu0 %v399, 28
    %v1893 = vpop.permute.xlu0 %1892
    %1894 = vrot.lane.b32.xlu0 %v402, 28
    %v1895 = vpop.permute.xlu0 %1894
    %1896 = vrot.lane.b32.xlu0 %v404, 28
    %v1897 = vpop.permute.xlu0 %1896
    %1898 = vrot.lane.b32.xlu0 %v407, 28
    %v1899 = vpop.permute.xlu0 %1898
    %1900 = vrot.lane.b32.xlu0 %v409, 28
    %v1901 = vpop.permute.xlu0 %1900
    %1902 = vrot.lane.b32.xlu0 %v412, 28
    %v1903 = vpop.permute.xlu0 %1902
    %1904 = vrot.lane.b32.xlu0 %v414, 28
    %v1905 = vpop.permute.xlu0 %1904
    %1906 = vrot.lane.b32.xlu0 %v1240, 28
    %v1907 = vpop.permute.xlu0 %1906
    %1908 = vrot.lane.b32.xlu0 %v1242, 28
    %v1909 = vpop.permute.xlu0 %1908
    %1910 = vrot.lane.b32.xlu0 %v1842, 28
    %v1911 = vpop.permute.xlu0 %1910
    %1912 = vrot.lane.b32.xlu0 %v1844, 28
    %v1913 = vpop.permute.xlu0 %1912
    %1914 = vrot.lane.b32.xlu0 %v427, 28
    %v1915 = vpop.permute.xlu0 %1914
    %1916 = vrot.lane.b32.xlu0 %v429, 28
    %v1917 = vpop.permute.xlu0 %1916
    %1918 = vrot.lane.b32.xlu0 %v432, 28
    %v1919 = vpop.permute.xlu0 %1918
    %1920 = vrot.lane.b32.xlu0 %v434, 28
    %v1921 = vpop.permute.xlu0 %1920
    %1922 = vrot.lane.b32.xlu0 %v437, 28
    %v1923 = vpop.permute.xlu0 %1922
    %1924 = vrot.lane.b32.xlu0 %v439, 28
    %v1925 = vpop.permute.xlu0 %1924
    %1926 = vrot.lane.b32.xlu0 %v442, 28
    %v1927 = vpop.permute.xlu0 %1926
    %1928 = vrot.lane.b32.xlu0 %v444, 28
    %v1929 = vpop.permute.xlu0 %1928
    %1930 = vrot.lane.b32.xlu0 %v447, 28
    %v1931 = vpop.permute.xlu0 %1930
    %1932 = vrot.lane.b32.xlu0 %v449, 28
    %v1933 = vpop.permute.xlu0 %1932
    %1934 = vrot.lane.b32.xlu0 %v452, 28
    %v1935 = vpop.permute.xlu0 %1934
    %1936 = vrot.lane.b32.xlu0 %v454, 28
    %v1937 = vpop.permute.xlu0 %1936
    %1938 = vrot.lane.b32.xlu0 %v457, 28
    %v1939 = vpop.permute.xlu0 %1938
    %1940 = vrot.lane.b32.xlu0 %v459, 28
    %v1941 = vpop.permute.xlu0 %1940
    %1942 = vrot.lane.b32.xlu0 %v462, 28
    %v1943 = vpop.permute.xlu0 %1942
    %1944 = vrot.lane.b32.xlu0 %v464, 28
    %v1945 = vpop.permute.xlu0 %1944
    %1946 = vrot.lane.b32.xlu0 %v467, 28
    %v1947 = vpop.permute.xlu0 %1946
    %1948 = vrot.lane.b32.xlu0 %v469, 28
    %v1949 = vpop.permute.xlu0 %1948
    %1950 = vrot.lane.b32.xlu0 %v472, 28
    %v1951 = vpop.permute.xlu0 %1950
    %1952 = vrot.lane.b32.xlu0 %v474, 28
    %v1953 = vpop.permute.xlu0 %1952
    %1954 = vrot.lane.b32.xlu0 %v477, 28
    %v1955 = vpop.permute.xlu0 %1954
    %1956 = vrot.lane.b32.xlu0 %v479, 28
    %v1957 = vpop.permute.xlu0 %1956
    %1958 = vrot.lane.b32.xlu0 %v482, 28
    %v1959 = vpop.permute.xlu0 %1958
    %1960 = vrot.lane.b32.xlu0 %v484, 28
    %v1961 = vpop.permute.xlu0 %1960
    %1962 = vrot.lane.b32.xlu0 %v487, 28
    %v1963 = vpop.permute.xlu0 %1962
    %1964 = vrot.lane.b32.xlu0 %v489, 28
    %v1965 = vpop.permute.xlu0 %1964
    %1966 = vrot.lane.b32.xlu0 %v492, 28
    %v1967 = vpop.permute.xlu0 %1966
    %1968 = vrot.lane.b32.xlu0 %v494, 28
    %v1969 = vpop.permute.xlu0 %1968
    %1970 = vrot.lane.b32.xlu0 %v1245, 28
    %v1971 = vpop.permute.xlu0 %1970
    %1972 = vrot.lane.b32.xlu0 %v1247, 28
    %v1973 = vpop.permute.xlu0 %1972
    %1974 = vrot.lane.b32.xlu0 %v1847, 28
    %v1975 = vpop.permute.xlu0 %1974
    %1976 = vrot.lane.b32.xlu0 %v1849, 28
    %v1977 = vpop.permute.xlu0 %1976
    %v2042 = vrot.slane %v181, 2
    %v2043 = vrot.slane %v182, 2
    %v2044 = vsel %vm687, %v2042, %v2043
    %v2045 = vrot.slane %v183, 2
    %v2046 = vsel %vm687, %v2043, %v2045
    %v2047 = vrot.slane %v235, 2
    %v2048 = vrot.slane %v236, 2
    %v2049 = vsel %vm687, %v2047, %v2048
    %v2050 = vrot.slane %v237, 2
    %v2051 = vsel %vm687, %v2048, %v2050
    %2052 = vrot.lane.b32.xlu0 %v700, 32
    %v2053 = vpop.permute.xlu0 %2052
    %2054 = vrot.lane.b32.xlu0 %v702, 32
    %v2055 = vpop.permute.xlu0 %2054
    %2056 = vrot.lane.b32.xlu0 %v705, 32
    %v2057 = vpop.permute.xlu0 %2056
    %2058 = vrot.lane.b32.xlu0 %v707, 32
    %v2059 = vpop.permute.xlu0 %2058
    %2060 = vrot.lane.b32.xlu0 %v710, 32
    %v2061 = vpop.permute.xlu0 %2060
    %2062 = vrot.lane.b32.xlu0 %v712, 32
    %v2063 = vpop.permute.xlu0 %2062
    %2064 = vrot.lane.b32.xlu0 %v715, 32
    %v2065 = vpop.permute.xlu0 %2064
    %2066 = vrot.lane.b32.xlu0 %v717, 32
    %v2067 = vpop.permute.xlu0 %2066
    %2068 = vrot.lane.b32.xlu0 %v720, 32
    %v2069 = vpop.permute.xlu0 %2068
    %2070 = vrot.lane.b32.xlu0 %v722, 32
    %v2071 = vpop.permute.xlu0 %2070
    %2072 = vrot.lane.b32.xlu0 %v725, 32
    %v2073 = vpop.permute.xlu0 %2072
    %2074 = vrot.lane.b32.xlu0 %v727, 32
    %v2075 = vpop.permute.xlu0 %2074
    %2076 = vrot.lane.b32.xlu0 %v730, 32
    %v2077 = vpop.permute.xlu0 %2076
    %2078 = vrot.lane.b32.xlu0 %v732, 32
    %v2079 = vpop.permute.xlu0 %2078
    %2080 = vrot.lane.b32.xlu0 %v735, 32
    %v2081 = vpop.permute.xlu0 %2080
    %2082 = vrot.lane.b32.xlu0 %v737, 32
    %v2083 = vpop.permute.xlu0 %2082
    %2084 = vrot.lane.b32.xlu0 %v740, 32
    %v2085 = vpop.permute.xlu0 %2084
    %2086 = vrot.lane.b32.xlu0 %v742, 32
    %v2087 = vpop.permute.xlu0 %2086
    %2088 = vrot.lane.b32.xlu0 %v745, 32
    %v2089 = vpop.permute.xlu0 %2088
    %2090 = vrot.lane.b32.xlu0 %v747, 32
    %v2091 = vpop.permute.xlu0 %2090
    %2092 = vrot.lane.b32.xlu0 %v750, 32
    %v2093 = vpop.permute.xlu0 %2092
    %2094 = vrot.lane.b32.xlu0 %v752, 32
    %v2095 = vpop.permute.xlu0 %2094
    %2096 = vrot.lane.b32.xlu0 %v755, 32
    %v2097 = vpop.permute.xlu0 %2096
    %2098 = vrot.lane.b32.xlu0 %v757, 32
    %v2099 = vpop.permute.xlu0 %2098
    %2100 = vrot.lane.b32.xlu0 %v760, 32
    %v2101 = vpop.permute.xlu0 %2100
    %2102 = vrot.lane.b32.xlu0 %v762, 32
    %v2103 = vpop.permute.xlu0 %2102
    %2104 = vrot.lane.b32.xlu0 %v765, 32
    %v2105 = vpop.permute.xlu0 %2104
    %2106 = vrot.lane.b32.xlu0 %v767, 32
    %v2107 = vpop.permute.xlu0 %2106
    %2108 = vrot.lane.b32.xlu0 %v1442, 32
    %v2109 = vpop.permute.xlu0 %2108
    %2110 = vrot.lane.b32.xlu0 %v1444, 32
    %v2111 = vpop.permute.xlu0 %2110
    %2112 = vrot.lane.b32.xlu0 %v2044, 32
    %v2113 = vpop.permute.xlu0 %2112
    %2114 = vrot.lane.b32.xlu0 %v2046, 32
    %v2115 = vpop.permute.xlu0 %2114
    %2116 = vrot.lane.b32.xlu0 %v780, 32
    %v2117 = vpop.permute.xlu0 %2116
    %2118 = vrot.lane.b32.xlu0 %v782, 32
    %v2119 = vpop.permute.xlu0 %2118
    %2120 = vrot.lane.b32.xlu0 %v785, 32
    %v2121 = vpop.permute.xlu0 %2120
    %2122 = vrot.lane.b32.xlu0 %v787, 32
    %v2123 = vpop.permute.xlu0 %2122
    %2124 = vrot.lane.b32.xlu0 %v790, 32
    %v2125 = vpop.permute.xlu0 %2124
    %2126 = vrot.lane.b32.xlu0 %v792, 32
    %v2127 = vpop.permute.xlu0 %2126
    %2128 = vrot.lane.b32.xlu0 %v795, 32
    %v2129 = vpop.permute.xlu0 %2128
    %2130 = vrot.lane.b32.xlu0 %v797, 32
    %v2131 = vpop.permute.xlu0 %2130
    %2132 = vrot.lane.b32.xlu0 %v800, 32
    %v2133 = vpop.permute.xlu0 %2132
    %2134 = vrot.lane.b32.xlu0 %v802, 32
    %v2135 = vpop.permute.xlu0 %2134
    %2136 = vrot.lane.b32.xlu0 %v805, 32
    %v2137 = vpop.permute.xlu0 %2136
    %2138 = vrot.lane.b32.xlu0 %v807, 32
    %v2139 = vpop.permute.xlu0 %2138
    %2140 = vrot.lane.b32.xlu0 %v810, 32
    %v2141 = vpop.permute.xlu0 %2140
    %2142 = vrot.lane.b32.xlu0 %v812, 32
    %v2143 = vpop.permute.xlu0 %2142
    %2144 = vrot.lane.b32.xlu0 %v815, 32
    %v2145 = vpop.permute.xlu0 %2144
    %2146 = vrot.lane.b32.xlu0 %v817, 32
    %v2147 = vpop.permute.xlu0 %2146
    %2148 = vrot.lane.b32.xlu0 %v820, 32
    %v2149 = vpop.permute.xlu0 %2148
    %2150 = vrot.lane.b32.xlu0 %v822, 32
    %v2151 = vpop.permute.xlu0 %2150
    %2152 = vrot.lane.b32.xlu0 %v825, 32
    %v2153 = vpop.permute.xlu0 %2152
    %2154 = vrot.lane.b32.xlu0 %v827, 32
    %v2155 = vpop.permute.xlu0 %2154
    %2156 = vrot.lane.b32.xlu0 %v830, 32
    %v2157 = vpop.permute.xlu0 %2156
    %2158 = vrot.lane.b32.xlu0 %v832, 32
    %v2159 = vpop.permute.xlu0 %2158
    %2160 = vrot.lane.b32.xlu0 %v835, 32
    %v2161 = vpop.permute.xlu0 %2160
    %2162 = vrot.lane.b32.xlu0 %v837, 32
    %v2163 = vpop.permute.xlu0 %2162
    %2164 = vrot.lane.b32.xlu0 %v840, 32
    %v2165 = vpop.permute.xlu0 %2164
    %2166 = vrot.lane.b32.xlu0 %v842, 32
    %v2167 = vpop.permute.xlu0 %2166
    %2168 = vrot.lane.b32.xlu0 %v845, 32
    %v2169 = vpop.permute.xlu0 %2168
    %2170 = vrot.lane.b32.xlu0 %v847, 32
    %v2171 = vpop.permute.xlu0 %2170
    %2172 = vrot.lane.b32.xlu0 %v1447, 32
    %v2173 = vpop.permute.xlu0 %2172
    %2174 = vrot.lane.b32.xlu0 %v1449, 32
    %v2175 = vpop.permute.xlu0 %2174
    %2176 = vrot.lane.b32.xlu0 %v2049, 32
    %v2177 = vpop.permute.xlu0 %2176
    %2178 = vrot.lane.b32.xlu0 %v2051, 32
    %v2179 = vpop.permute.xlu0 %2178
    %vm2244 = vcmask 31744
    %v2245 = vsel %vm2244, %v130, %v496
    %v2246 = vsel %vm2244, %v131, %v498
    %v2247 = vsel %vm2244, %v133, %v500
    %v2248 = vsel %vm2244, %v134, %v502
    %v2249 = vsel %vm2244, %v136, %v504
    %v2250 = vsel %vm2244, %v137, %v506
    %v2251 = vsel %vm2244, %v139, %v508
    %v2252 = vsel %vm2244, %v140, %v510
    %v2253 = vsel %vm2244, %v142, %v512
    %v2254 = vsel %vm2244, %v143, %v514
    %v2255 = vsel %vm2244, %v145, %v516
    %v2256 = vsel %vm2244, %v146, %v518
    %v2257 = vsel %vm2244, %v148, %v520
    %v2258 = vsel %vm2244, %v149, %v522
    %v2259 = vsel %vm2244, %v151, %v524
    %v2260 = vsel %vm2244, %v152, %v526
    %v2261 = vsel %vm2244, %v154, %v528
    %v2262 = vsel %vm2244, %v155, %v530
    %v2263 = vsel %vm2244, %v157, %v532
    %v2264 = vsel %vm2244, %v158, %v534
    %v2265 = vsel %vm2244, %v160, %v536
    %v2266 = vsel %vm2244, %v161, %v538
    %v2267 = vsel %vm2244, %v163, %v540
    %v2268 = vsel %vm2244, %v164, %v542
    %v2269 = vsel %vm2244, %v166, %v544
    %v2270 = vsel %vm2244, %v167, %v546
    %v2271 = vsel %vm2244, %v169, %v548
    %v2272 = vsel %vm2244, %v170, %v550
    %v2273 = vsel %vm2244, %v172, %v552
    %v2274 = vsel %vm2244, %v173, %v554
    %v2275 = vsel %vm2244, %v175, %v556
    %v2276 = vsel %vm2244, %v176, %v558
    %v2277 = vsel %vm2244, %v184, %v560
    %v2278 = vsel %vm2244, %v185, %v562
    %v2279 = vsel %vm2244, %v187, %v564
    %v2280 = vsel %vm2244, %v188, %v566
    %v2281 = vsel %vm2244, %v190, %v568
    %v2282 = vsel %vm2244, %v191, %v570
    %v2283 = vsel %vm2244, %v193, %v572
    %v2284 = vsel %vm2244, %v194, %v574
    %v2285 = vsel %vm2244, %v196, %v576
    %v2286 = vsel %vm2244, %v197, %v578
    %v2287 = vsel %vm2244, %v199, %v580
    %v2288 = vsel %vm2244, %v200, %v582
    %v2289 = vsel %vm2244, %v202, %v584
    %v2290 = vsel %vm2244, %v203, %v586
    %v2291 = vsel %vm2244, %v205, %v588
    %v2292 = vsel %vm2244, %v206, %v590
    %v2293 = vsel %vm2244, %v208, %v592
    %v2294 = vsel %vm2244, %v209, %v594
    %v2295 = vsel %vm2244, %v211, %v596
    %v2296 = vsel %vm2244, %v212, %v598
    %v2297 = vsel %vm2244, %v214, %v600
    %v2298 = vsel %vm2244, %v215, %v602
    %v2299 = vsel %vm2244, %v217, %v604
    %v2300 = vsel %vm2244, %v218, %v606
    %v2301 = vsel %vm2244, %v220, %v608
    %v2302 = vsel %vm2244, %v221, %v610
    %v2303 = vsel %vm2244, %v223, %v612
    %v2304 = vsel %vm2244, %v224, %v614
    %v2305 = vsel %vm2244, %v226, %v616
    %v2306 = vsel %vm2244, %v227, %v618
    %v2307 = vsel %vm2244, %v229, %v620
    %v2308 = vsel %vm2244, %v230, %v622
    %vm2309 = vcmask 64512
    %v2310 = vsel %vm2309, %v2245, %v849
    %v2311 = vsel %vm2309, %v2246, %v851
    %v2312 = vsel %vm2309, %v2247, %v853
    %v2313 = vsel %vm2309, %v2248, %v855
    %v2314 = vsel %vm2309, %v2249, %v857
    %v2315 = vsel %vm2309, %v2250, %v859
    %v2316 = vsel %vm2309, %v2251, %v861
    %v2317 = vsel %vm2309, %v2252, %v863
    %v2318 = vsel %vm2309, %v2253, %v865
    %v2319 = vsel %vm2309, %v2254, %v867
    %v2320 = vsel %vm2309, %v2255, %v869
    %v2321 = vsel %vm2309, %v2256, %v871
    %v2322 = vsel %vm2309, %v2257, %v873
    %v2323 = vsel %vm2309, %v2258, %v875
    %v2324 = vsel %vm2309, %v2259, %v877
    %v2325 = vsel %vm2309, %v2260, %v879
    %v2326 = vsel %vm2309, %v2261, %v881
    %v2327 = vsel %vm2309, %v2262, %v883
    %v2328 = vsel %vm2309, %v2263, %v885
    %v2329 = vsel %vm2309, %v2264, %v887
    %v2330 = vsel %vm2309, %v2265, %v889
    %v2331 = vsel %vm2309, %v2266, %v891
    %v2332 = vsel %vm2309, %v2267, %v893
    %v2333 = vsel %vm2309, %v2268, %v895
    %v2334 = vsel %vm2309, %v2269, %v897
    %v2335 = vsel %vm2309, %v2270, %v899
    %v2336 = vsel %vm2309, %v2271, %v901
    %v2337 = vsel %vm2309, %v2272, %v903
    %v2338 = vsel %vm2309, %v2273, %v905
    %v2339 = vsel %vm2309, %v2274, %v907
    %v2340 = vsel %vm2309, %v2275, %v909
    %v2341 = vsel %vm2309, %v2276, %v911
    %v2342 = vsel %vm2309, %v2277, %v913
    %v2343 = vsel %vm2309, %v2278, %v915
    %v2344 = vsel %vm2309, %v2279, %v917
    %v2345 = vsel %vm2309, %v2280, %v919
    %v2346 = vsel %vm2309, %v2281, %v921
    %v2347 = vsel %vm2309, %v2282, %v923
    %v2348 = vsel %vm2309, %v2283, %v925
    %v2349 = vsel %vm2309, %v2284, %v927
    %v2350 = vsel %vm2309, %v2285, %v929
    %v2351 = vsel %vm2309, %v2286, %v931
    %v2352 = vsel %vm2309, %v2287, %v933
    %v2353 = vsel %vm2309, %v2288, %v935
    %v2354 = vsel %vm2309, %v2289, %v937
    %v2355 = vsel %vm2309, %v2290, %v939
    %v2356 = vsel %vm2309, %v2291, %v941
    %v2357 = vsel %vm2309, %v2292, %v943
    %v2358 = vsel %vm2309, %v2293, %v945
    %v2359 = vsel %vm2309, %v2294, %v947
    %v2360 = vsel %vm2309, %v2295, %v949
    %v2361 = vsel %vm2309, %v2296, %v951
    %v2362 = vsel %vm2309, %v2297, %v953
    %v2363 = vsel %vm2309, %v2298, %v955
    %v2364 = vsel %vm2309, %v2299, %v957
    %v2365 = vsel %vm2309, %v2300, %v959
    %v2366 = vsel %vm2309, %v2301, %v961
    %v2367 = vsel %vm2309, %v2302, %v963
    %v2368 = vsel %vm2309, %v2303, %v965
    %v2369 = vsel %vm2309, %v2304, %v967
    %v2370 = vsel %vm2309, %v2305, %v969
    %v2371 = vsel %vm2309, %v2306, %v971
    %v2372 = vsel %vm2309, %v2307, %v973
    %v2373 = vsel %vm2309, %v2308, %v975
    %vm2374 = vcmask 97280
    %v2375 = vsel %vm2374, %v2310, %v1045
    %v2376 = vsel %vm2374, %v2311, %v1047
    %v2377 = vsel %vm2374, %v2312, %v1049
    %v2378 = vsel %vm2374, %v2313, %v1051
    %v2379 = vsel %vm2374, %v2314, %v1053
    %v2380 = vsel %vm2374, %v2315, %v1055
    %v2381 = vsel %vm2374, %v2316, %v1057
    %v2382 = vsel %vm2374, %v2317, %v1059
    %v2383 = vsel %vm2374, %v2318, %v1061
    %v2384 = vsel %vm2374, %v2319, %v1063
    %v2385 = vsel %vm2374, %v2320, %v1065
    %v2386 = vsel %vm2374, %v2321, %v1067
    %v2387 = vsel %vm2374, %v2322, %v1069
    %v2388 = vsel %vm2374, %v2323, %v1071
    %v2389 = vsel %vm2374, %v2324, %v1073
    %v2390 = vsel %vm2374, %v2325, %v1075
    %v2391 = vsel %vm2374, %v2326, %v1077
    %v2392 = vsel %vm2374, %v2327, %v1079
    %v2393 = vsel %vm2374, %v2328, %v1081
    %v2394 = vsel %vm2374, %v2329, %v1083
    %v2395 = vsel %vm2374, %v2330, %v1085
    %v2396 = vsel %vm2374, %v2331, %v1087
    %v2397 = vsel %vm2374, %v2332, %v1089
    %v2398 = vsel %vm2374, %v2333, %v1091
    %v2399 = vsel %vm2374, %v2334, %v1093
    %v2400 = vsel %vm2374, %v2335, %v1095
    %v2401 = vsel %vm2374, %v2336, %v1097
    %v2402 = vsel %vm2374, %v2337, %v1099
    %v2403 = vsel %vm2374, %v2338, %v1101
    %v2404 = vsel %vm2374, %v2339, %v1103
    %v2405 = vsel %vm2374, %v2340, %v1105
    %v2406 = vsel %vm2374, %v2341, %v1107
    %v2407 = vsel %vm2374, %v2342, %v1109
    %v2408 = vsel %vm2374, %v2343, %v1111
    %v2409 = vsel %vm2374, %v2344, %v1113
    %v2410 = vsel %vm2374, %v2345, %v1115
    %v2411 = vsel %vm2374, %v2346, %v1117
    %v2412 = vsel %vm2374, %v2347, %v1119
    %v2413 = vsel %vm2374, %v2348, %v1121
    %v2414 = vsel %vm2374, %v2349, %v1123
    %v2415 = vsel %vm2374, %v2350, %v1125
    %v2416 = vsel %vm2374, %v2351, %v1127
    %v2417 = vsel %vm2374, %v2352, %v1129
    %v2418 = vsel %vm2374, %v2353, %v1131
    %v2419 = vsel %vm2374, %v2354, %v1133
    %v2420 = vsel %vm2374, %v2355, %v1135
    %v2421 = vsel %vm2374, %v2356, %v1137
    %v2422 = vsel %vm2374, %v2357, %v1139
    %v2423 = vsel %vm2374, %v2358, %v1141
    %v2424 = vsel %vm2374, %v2359, %v1143
    %v2425 = vsel %vm2374, %v2360, %v1145
    %v2426 = vsel %vm2374, %v2361, %v1147
    %v2427 = vsel %vm2374, %v2362, %v1149
    %v2428 = vsel %vm2374, %v2363, %v1151
    %v2429 = vsel %vm2374, %v2364, %v1153
    %v2430 = vsel %vm2374, %v2365, %v1155
    %v2431 = vsel %vm2374, %v2366, %v1157
    %v2432 = vsel %vm2374, %v2367, %v1159
    %v2433 = vsel %vm2374, %v2368, %v1161
    %v2434 = vsel %vm2374, %v2369, %v1163
    %v2435 = vsel %vm2374, %v2370, %v1165
    %v2436 = vsel %vm2374, %v2371, %v1167
    %v2437 = vsel %vm2374, %v2372, %v1169
    %v2438 = vsel %vm2374, %v2373, %v1171
    %vm2439 = vcmask 130048
    %v2440 = vsel %vm2439, %v2375, %v1249
    %v2441 = vsel %vm2439, %v2376, %v1251
    %v2442 = vsel %vm2439, %v2377, %v1253
    %v2443 = vsel %vm2439, %v2378, %v1255
    %v2444 = vsel %vm2439, %v2379, %v1257
    %v2445 = vsel %vm2439, %v2380, %v1259
    %v2446 = vsel %vm2439, %v2381, %v1261
    %v2447 = vsel %vm2439, %v2382, %v1263
    %v2448 = vsel %vm2439, %v2383, %v1265
    %v2449 = vsel %vm2439, %v2384, %v1267
    %v2450 = vsel %vm2439, %v2385, %v1269
    %v2451 = vsel %vm2439, %v2386, %v1271
    %v2452 = vsel %vm2439, %v2387, %v1273
    %v2453 = vsel %vm2439, %v2388, %v1275
    %v2454 = vsel %vm2439, %v2389, %v1277
    %v2455 = vsel %vm2439, %v2390, %v1279
    %v2456 = vsel %vm2439, %v2391, %v1281
    %v2457 = vsel %vm2439, %v2392, %v1283
    %v2458 = vsel %vm2439, %v2393, %v1285
    %v2459 = vsel %vm2439, %v2394, %v1287
    %v2460 = vsel %vm2439, %v2395, %v1289
    %v2461 = vsel %vm2439, %v2396, %v1291
    %v2462 = vsel %vm2439, %v2397, %v1293
    %v2463 = vsel %vm2439, %v2398, %v1295
    %v2464 = vsel %vm2439, %v2399, %v1297
    %v2465 = vsel %vm2439, %v2400, %v1299
    %v2466 = vsel %vm2439, %v2401, %v1301
    %v2467 = vsel %vm2439, %v2402, %v1303
    %v2468 = vsel %vm2439, %v2403, %v1305
    %v2469 = vsel %vm2439, %v2404, %v1307
    %v2470 = vsel %vm2439, %v2405, %v1309
    %v2471 = vsel %vm2439, %v2406, %v1311
    %v2472 = vsel %vm2439, %v2407, %v1313
    %v2473 = vsel %vm2439, %v2408, %v1315
    %v2474 = vsel %vm2439, %v2409, %v1317
    %v2475 = vsel %vm2439, %v2410, %v1319
    %v2476 = vsel %vm2439, %v2411, %v1321
    %v2477 = vsel %vm2439, %v2412, %v1323
    %v2478 = vsel %vm2439, %v2413, %v1325
    %v2479 = vsel %vm2439, %v2414, %v1327
    %v2480 = vsel %vm2439, %v2415, %v1329
    %v2481 = vsel %vm2439, %v2416, %v1331
    %v2482 = vsel %vm2439, %v2417, %v1333
    %v2483 = vsel %vm2439, %v2418, %v1335
    %v2484 = vsel %vm2439, %v2419, %v1337
    %v2485 = vsel %vm2439, %v2420, %v1339
    %v2486 = vsel %vm2439, %v2421, %v1341
    %v2487 = vsel %vm2439, %v2422, %v1343
    %v2488 = vsel %vm2439, %v2423, %v1345
    %v2489 = vsel %vm2439, %v2424, %v1347
    %v2490 = vsel %vm2439, %v2425, %v1349
    %v2491 = vsel %vm2439, %v2426, %v1351
    %v2492 = vsel %vm2439, %v2427, %v1353
    %v2493 = vsel %vm2439, %v2428, %v1355
    %v2494 = vsel %vm2439, %v2429, %v1357
    %v2495 = vsel %vm2439, %v2430, %v1359
    %v2496 = vsel %vm2439, %v2431, %v1361
    %v2497 = vsel %vm2439, %v2432, %v1363
    %v2498 = vsel %vm2439, %v2433, %v1365
    %v2499 = vsel %vm2439, %v2434, %v1367
    %v2500 = vsel %vm2439, %v2435, %v1369
    %v2501 = vsel %vm2439, %v2436, %v1371
    %v2502 = vsel %vm2439, %v2437, %v1373
    %v2503 = vsel %vm2439, %v2438, %v1375
    %vm2504 = vcmask 162816
    %v2505 = vsel %vm2504, %v2440, %v1451
    %v2506 = vsel %vm2504, %v2441, %v1453
    %v2507 = vsel %vm2504, %v2442, %v1455
    %v2508 = vsel %vm2504, %v2443, %v1457
    %v2509 = vsel %vm2504, %v2444, %v1459
    %v2510 = vsel %vm2504, %v2445, %v1461
    %v2511 = vsel %vm2504, %v2446, %v1463
    %v2512 = vsel %vm2504, %v2447, %v1465
    %v2513 = vsel %vm2504, %v2448, %v1467
    %v2514 = vsel %vm2504, %v2449, %v1469
    %v2515 = vsel %vm2504, %v2450, %v1471
    %v2516 = vsel %vm2504, %v2451, %v1473
    %v2517 = vsel %vm2504, %v2452, %v1475
    %v2518 = vsel %vm2504, %v2453, %v1477
    %v2519 = vsel %vm2504, %v2454, %v1479
    %v2520 = vsel %vm2504, %v2455, %v1481
    %v2521 = vsel %vm2504, %v2456, %v1483
    %v2522 = vsel %vm2504, %v2457, %v1485
    %v2523 = vsel %vm2504, %v2458, %v1487
    %v2524 = vsel %vm2504, %v2459, %v1489
    %v2525 = vsel %vm2504, %v2460, %v1491
    %v2526 = vsel %vm2504, %v2461, %v1493
    %v2527 = vsel %vm2504, %v2462, %v1495
    %v2528 = vsel %vm2504, %v2463, %v1497
    %v2529 = vsel %vm2504, %v2464, %v1499
    %v2530 = vsel %vm2504, %v2465, %v1501
    %v2531 = vsel %vm2504, %v2466, %v1503
    %v2532 = vsel %vm2504, %v2467, %v1505
    %v2533 = vsel %vm2504, %v2468, %v1507
    %v2534 = vsel %vm2504, %v2469, %v1509
    %v2535 = vsel %vm2504, %v2470, %v1511
    %v2536 = vsel %vm2504, %v2471, %v1513
    %v2537 = vsel %vm2504, %v2472, %v1515
    %v2538 = vsel %vm2504, %v2473, %v1517
    %v2539 = vsel %vm2504, %v2474, %v1519
    %v2540 = vsel %vm2504, %v2475, %v1521
    %v2541 = vsel %vm2504, %v2476, %v1523
    %v2542 = vsel %vm2504, %v2477, %v1525
    %v2543 = vsel %vm2504, %v2478, %v1527
    %v2544 = vsel %vm2504, %v2479, %v1529
    %v2545 = vsel %vm2504, %v2480, %v1531
    %v2546 = vsel %vm2504, %v2481, %v1533
    %v2547 = vsel %vm2504, %v2482, %v1535
    %v2548 = vsel %vm2504, %v2483, %v1537
    %v2549 = vsel %vm2504, %v2484, %v1539
    %v2550 = vsel %vm2504, %v2485, %v1541
    %v2551 = vsel %vm2504, %v2486, %v1543
    %v2552 = vsel %vm2504, %v2487, %v1545
    %v2553 = vsel %vm2504, %v2488, %v1547
    %v2554 = vsel %vm2504, %v2489, %v1549
    %v2555 = vsel %vm2504, %v2490, %v1551
    %v2556 = vsel %vm2504, %v2491, %v1553
    %v2557 = vsel %vm2504, %v2492, %v1555
    %v2558 = vsel %vm2504, %v2493, %v1557
    %v2559 = vsel %vm2504, %v2494, %v1559
    %v2560 = vsel %vm2504, %v2495, %v1561
    %v2561 = vsel %vm2504, %v2496, %v1563
    %v2562 = vsel %vm2504, %v2497, %v1565
    %v2563 = vsel %vm2504, %v2498, %v1567
    %v2564 = vsel %vm2504, %v2499, %v1569
    %v2565 = vsel %vm2504, %v2500, %v1571
    %v2566 = vsel %vm2504, %v2501, %v1573
    %v2567 = vsel %vm2504, %v2502, %v1575
    %v2568 = vsel %vm2504, %v2503, %v1577
    %vm2569 = vcmask 195584
    %v2570 = vsel %vm2569, %v2505, %v1647
    %v2571 = vsel %vm2569, %v2506, %v1649
    %v2572 = vsel %vm2569, %v2507, %v1651
    %v2573 = vsel %vm2569, %v2508, %v1653
    %v2574 = vsel %vm2569, %v2509, %v1655
    %v2575 = vsel %vm2569, %v2510, %v1657
    %v2576 = vsel %vm2569, %v2511, %v1659
    %v2577 = vsel %vm2569, %v2512, %v1661
    %v2578 = vsel %vm2569, %v2513, %v1663
    %v2579 = vsel %vm2569, %v2514, %v1665
    %v2580 = vsel %vm2569, %v2515, %v1667
    %v2581 = vsel %vm2569, %v2516, %v1669
    %v2582 = vsel %vm2569, %v2517, %v1671
    %v2583 = vsel %vm2569, %v2518, %v1673
    %v2584 = vsel %vm2569, %v2519, %v1675
    %v2585 = vsel %vm2569, %v2520, %v1677
    %v2586 = vsel %vm2569, %v2521, %v1679
    %v2587 = vsel %vm2569, %v2522, %v1681
    %v2588 = vsel %vm2569, %v2523, %v1683
    %v2589 = vsel %vm2569, %v2524, %v1685
    %v2590 = vsel %vm2569, %v2525, %v1687
    %v2591 = vsel %vm2569, %v2526, %v1689
    %v2592 = vsel %vm2569, %v2527, %v1691
    %v2593 = vsel %vm2569, %v2528, %v1693
    %v2594 = vsel %vm2569, %v2529, %v1695
    %v2595 = vsel %vm2569, %v2530, %v1697
    %v2596 = vsel %vm2569, %v2531, %v1699
    %v2597 = vsel %vm2569, %v2532, %v1701
    %v2598 = vsel %vm2569, %v2533, %v1703
    %v2599 = vsel %vm2569, %v2534, %v1705
    %v2600 = vsel %vm2569, %v2535, %v1707
    %v2601 = vsel %vm2569, %v2536, %v1709
    %v2602 = vsel %vm2569, %v2537, %v1711
    %v2603 = vsel %vm2569, %v2538, %v1713
    %v2604 = vsel %vm2569, %v2539, %v1715
    %v2605 = vsel %vm2569, %v2540, %v1717
    %v2606 = vsel %vm2569, %v2541, %v1719
    %v2607 = vsel %vm2569, %v2542, %v1721
    %v2608 = vsel %vm2569, %v2543, %v1723
    %v2609 = vsel %vm2569, %v2544, %v1725
    %v2610 = vsel %vm2569, %v2545, %v1727
    %v2611 = vsel %vm2569, %v2546, %v1729
    %v2612 = vsel %vm2569, %v2547, %v1731
    %v2613 = vsel %vm2569, %v2548, %v1733
    %v2614 = vsel %vm2569, %v2549, %v1735
    %v2615 = vsel %vm2569, %v2550, %v1737
    %v2616 = vsel %vm2569, %v2551, %v1739
    %v2617 = vsel %vm2569, %v2552, %v1741
    %v2618 = vsel %vm2569, %v2553, %v1743
    %v2619 = vsel %vm2569, %v2554, %v1745
    %v2620 = vsel %vm2569, %v2555, %v1747
    %v2621 = vsel %vm2569, %v2556, %v1749
    %v2622 = vsel %vm2569, %v2557, %v1751
    %v2623 = vsel %vm2569, %v2558, %v1753
    %v2624 = vsel %vm2569, %v2559, %v1755
    %v2625 = vsel %vm2569, %v2560, %v1757
    %v2626 = vsel %vm2569, %v2561, %v1759
    %v2627 = vsel %vm2569, %v2562, %v1761
    %v2628 = vsel %vm2569, %v2563, %v1763
    %v2629 = vsel %vm2569, %v2564, %v1765
    %v2630 = vsel %vm2569, %v2565, %v1767
    %v2631 = vsel %vm2569, %v2566, %v1769
    %v2632 = vsel %vm2569, %v2567, %v1771
    %v2633 = vsel %vm2569, %v2568, %v1773
    %vm2634 = vcmask 228352
    %v2635 = vsel %vm2634, %v2570, %v1851
    %v2636 = vsel %vm2634, %v2571, %v1853
    %v2637 = vsel %vm2634, %v2572, %v1855
    %v2638 = vsel %vm2634, %v2573, %v1857
    %v2639 = vsel %vm2634, %v2574, %v1859
    %v2640 = vsel %vm2634, %v2575, %v1861
    %v2641 = vsel %vm2634, %v2576, %v1863
    %v2642 = vsel %vm2634, %v2577, %v1865
    %v2643 = vsel %vm2634, %v2578, %v1867
    %v2644 = vsel %vm2634, %v2579, %v1869
    %v2645 = vsel %vm2634, %v2580, %v1871
    %v2646 = vsel %vm2634, %v2581, %v1873
    %v2647 = vsel %vm2634, %v2582, %v1875
    %v2648 = vsel %vm2634, %v2583, %v1877
    %v2649 = vsel %vm2634, %v2584, %v1879
    %v2650 = vsel %vm2634, %v2585, %v1881
    %v2651 = vsel %vm2634, %v2586, %v1883
    %v2652 = vsel %vm2634, %v2587, %v1885
    %v2653 = vsel %vm2634, %v2588, %v1887
    %v2654 = vsel %vm2634, %v2589, %v1889
    %v2655 = vsel %vm2634, %v2590, %v1891
    %v2656 = vsel %vm2634, %v2591, %v1893
    %v2657 = vsel %vm2634, %v2592, %v1895
    %v2658 = vsel %vm2634, %v2593, %v1897
    %v2659 = vsel %vm2634, %v2594, %v1899
    %v2660 = vsel %vm2634, %v2595, %v1901
    %v2661 = vsel %vm2634, %v2596, %v1903
    %v2662 = vsel %vm2634, %v2597, %v1905
    %v2663 = vsel %vm2634, %v2598, %v1907
    %v2664 = vsel %vm2634, %v2599, %v1909
    %v2665 = vsel %vm2634, %v2600, %v1911
    %v2666 = vsel %vm2634, %v2601, %v1913
    %v2667 = vsel %vm2634, %v2602, %v1915
    %v2668 = vsel %vm2634, %v2603, %v1917
    %v2669 = vsel %vm2634, %v2604, %v1919
    %v2670 = vsel %vm2634, %v2605, %v1921
    %v2671 = vsel %vm2634, %v2606, %v1923
    %v2672 = vsel %vm2634, %v2607, %v1925
    %v2673 = vsel %vm2634, %v2608, %v1927
    %v2674 = vsel %vm2634, %v2609, %v1929
    %v2675 = vsel %vm2634, %v2610, %v1931
    %v2676 = vsel %vm2634, %v2611, %v1933
    %v2677 = vsel %vm2634, %v2612, %v1935
    %v2678 = vsel %vm2634, %v2613, %v1937
    %v2679 = vsel %vm2634, %v2614, %v1939
    %v2680 = vsel %vm2634, %v2615, %v1941
    %v2681 = vsel %vm2634, %v2616, %v1943
    %v2682 = vsel %vm2634, %v2617, %v1945
    %v2683 = vsel %vm2634, %v2618, %v1947
    %v2684 = vsel %vm2634, %v2619, %v1949
    %v2685 = vsel %vm2634, %v2620, %v1951
    %v2686 = vsel %vm2634, %v2621, %v1953
    %v2687 = vsel %vm2634, %v2622, %v1955
    %v2688 = vsel %vm2634, %v2623, %v1957
    %v2689 = vsel %vm2634, %v2624, %v1959
    %v2690 = vsel %vm2634, %v2625, %v1961
    %v2691 = vsel %vm2634, %v2626, %v1963
    %v2692 = vsel %vm2634, %v2627, %v1965
    %v2693 = vsel %vm2634, %v2628, %v1967
    %v2694 = vsel %vm2634, %v2629, %v1969
    %v2695 = vsel %vm2634, %v2630, %v1971
    %v2696 = vsel %vm2634, %v2631, %v1973
    %v2697 = vsel %vm2634, %v2632, %v1975
    %v2698 = vsel %vm2634, %v2633, %v1977
    %vm2699 = vcmask 261120
    %v2700 = vsel %vm2699, %v2635, %v2053
    %v2701 = vsel %vm2699, %v2636, %v2055
    %v2702 = vsel %vm2699, %v2637, %v2057
    %v2703 = vsel %vm2699, %v2638, %v2059
    %v2704 = vsel %vm2699, %v2639, %v2061
    %v2705 = vsel %vm2699, %v2640, %v2063
    %v2706 = vsel %vm2699, %v2641, %v2065
    %v2707 = vsel %vm2699, %v2642, %v2067
    %v2708 = vsel %vm2699, %v2643, %v2069
    %v2709 = vsel %vm2699, %v2644, %v2071
    %v2710 = vsel %vm2699, %v2645, %v2073
    %v2711 = vsel %vm2699, %v2646, %v2075
    %v2712 = vsel %vm2699, %v2647, %v2077
    %v2713 = vsel %vm2699, %v2648, %v2079
    %v2714 = vsel %vm2699, %v2649, %v2081
    %v2715 = vsel %vm2699, %v2650, %v2083
    %v2716 = vsel %vm2699, %v2651, %v2085
    %v2717 = vsel %vm2699, %v2652, %v2087
    %v2718 = vsel %vm2699, %v2653, %v2089
    %v2719 = vsel %vm2699, %v2654, %v2091
    %v2720 = vsel %vm2699, %v2655, %v2093
    %v2721 = vsel %vm2699, %v2656, %v2095
    %v2722 = vsel %vm2699, %v2657, %v2097
    %v2723 = vsel %vm2699, %v2658, %v2099
    %v2724 = vsel %vm2699, %v2659, %v2101
    %v2725 = vsel %vm2699, %v2660, %v2103
    %v2726 = vsel %vm2699, %v2661, %v2105
    %v2727 = vsel %vm2699, %v2662, %v2107
    %v2728 = vsel %vm2699, %v2663, %v2109
    %v2729 = vsel %vm2699, %v2664, %v2111
    %v2730 = vsel %vm2699, %v2665, %v2113
    %v2731 = vsel %vm2699, %v2666, %v2115
    %v2732 = vsel %vm2699, %v2667, %v2117
    %v2733 = vsel %vm2699, %v2668, %v2119
    %v2734 = vsel %vm2699, %v2669, %v2121
    %v2735 = vsel %vm2699, %v2670, %v2123
    %v2736 = vsel %vm2699, %v2671, %v2125
    %v2737 = vsel %vm2699, %v2672, %v2127
    %v2738 = vsel %vm2699, %v2673, %v2129
    %v2739 = vsel %vm2699, %v2674, %v2131
    %v2740 = vsel %vm2699, %v2675, %v2133
    %v2741 = vsel %vm2699, %v2676, %v2135
    %v2742 = vsel %vm2699, %v2677, %v2137
    %v2743 = vsel %vm2699, %v2678, %v2139
    %v2744 = vsel %vm2699, %v2679, %v2141
    %v2745 = vsel %vm2699, %v2680, %v2143
    %v2746 = vsel %vm2699, %v2681, %v2145
    %v2747 = vsel %vm2699, %v2682, %v2147
    %v2748 = vsel %vm2699, %v2683, %v2149
    %v2749 = vsel %vm2699, %v2684, %v2151
    %v2750 = vsel %vm2699, %v2685, %v2153
    %v2751 = vsel %vm2699, %v2686, %v2155
    %v2752 = vsel %vm2699, %v2687, %v2157
    %v2753 = vsel %vm2699, %v2688, %v2159
    %v2754 = vsel %vm2699, %v2689, %v2161
    %v2755 = vsel %vm2699, %v2690, %v2163
    %v2756 = vsel %vm2699, %v2691, %v2165
    %v2757 = vsel %vm2699, %v2692, %v2167
    %v2758 = vsel %vm2699, %v2693, %v2169
    %v2759 = vsel %vm2699, %v2694, %v2171
    %v2760 = vsel %vm2699, %v2695, %v2173
    %v2761 = vsel %vm2699, %v2696, %v2175
    %v2762 = vsel %vm2699, %v2697, %v2177
    %v2763 = vsel %vm2699, %v2698, %v2179
    %v2764 = vpack.c.bf16 %v2701, %v2700
    %v2765 = vpack.c.bf16 %v2703, %v2702
    %v2766 = vpack.c.bf16 %v2705, %v2704
    %v2767 = vpack.c.bf16 %v2707, %v2706
    %v2768 = vpack.c.bf16 %v2709, %v2708
    %v2769 = vpack.c.bf16 %v2711, %v2710
    %v2770 = vpack.c.bf16 %v2713, %v2712
    %v2771 = vpack.c.bf16 %v2715, %v2714
    %v2772 = vpack.c.bf16 %v2717, %v2716
    %v2773 = vpack.c.bf16 %v2719, %v2718
    %v2774 = vpack.c.bf16 %v2721, %v2720
    %v2775 = vpack.c.bf16 %v2723, %v2722
    %v2776 = vpack.c.bf16 %v2725, %v2724
    %v2777 = vpack.c.bf16 %v2727, %v2726
    %v2778 = vpack.c.bf16 %v2729, %v2728
    %v2779 = vpack.c.bf16 %v2731, %v2730
    %v2780 = vpack.c.bf16 %v2733, %v2732
    %v2781 = vpack.c.bf16 %v2735, %v2734
    %v2782 = vpack.c.bf16 %v2737, %v2736
    %v2783 = vpack.c.bf16 %v2739, %v2738
    %v2784 = vpack.c.bf16 %v2741, %v2740
    %v2785 = vpack.c.bf16 %v2743, %v2742
    %v2786 = vpack.c.bf16 %v2745, %v2744
    %v2787 = vpack.c.bf16 %v2747, %v2746
    %v2788 = vpack.c.bf16 %v2749, %v2748
    %v2789 = vpack.c.bf16 %v2751, %v2750
    %v2790 = vpack.c.bf16 %v2753, %v2752
    %v2791 = vpack.c.bf16 %v2755, %v2754
    %v2792 = vpack.c.bf16 %v2757, %v2756
    %v2793 = vpack.c.bf16 %v2759, %v2758
    %v2794 = vpack.c.bf16 %v2761, %v2760
    %v2795 = vpack.c.bf16 %v2763, %v2762
    %v2796 = vld [vmem:[%s1] sm:$0xf]
    %v2797 = vld [vmem:[%s1 + $0x4] sm:$0xf]
    %v2798 = vld [vmem:[%s1 + $0x8] sm:$0xf]
    %v2799 = vld [vmem:[%s1 + $0xc] sm:$0xf]
    %v2800 = vld [vmem:[%s1 + $0x10] sm:$0x3]
    %v2801 = vld [vmem:[%s2] sm:$0x1]
    %v2803 = vlaneseq
    %v2804 = vshrl.u32 %v2803, 7
    %v2805 = vsub.s32 0, %v2804
    %v2806 = vrot.slane %v2801, %v2805
    %v2813 = vunpack.c.l.b16 %v2796
    %v2814 = vunpack.c.l.b16 %v2797
    %v2815 = vunpack.c.l.b16 %v2798
    %v2816 = vunpack.c.l.b16 %v2799
    %v2817 = vunpack.c.l.b16 %v2800
    %v2818 = vpack.c.b16 %v2814, %v2813
    %v2819 = vpack.c.b16 %v2816, %v2815
    %v2820 = vpack.c.b16 %v2817, %v2817
    %vm2823 = vcmask 293888
    %v2825 = vsel %vm2823, %v2764, 0
    %v2828 = vsel %vm2823, %v2765, 0
    %v2831 = vsel %vm2823, %v2766, 0
    %v2834 = vsel %vm2823, %v2767, 0
    %v2837 = vsel %vm2823, %v2768, 0
    %v2840 = vsel %vm2823, %v2769, 0
    %v2843 = vsel %vm2823, %v2770, 0
    %v2846 = vsel %vm2823, %v2771, 0
    %v2849 = vsel %vm2823, %v2772, 0
    %v2852 = vsel %vm2823, %v2773, 0
    %v2855 = vsel %vm2823, %v2774, 0
    %v2858 = vsel %vm2823, %v2775, 0
    %v2861 = vsel %vm2823, %v2776, 0
    %v2864 = vsel %vm2823, %v2777, 0
    %v2867 = vsel %vm2823, %v2778, 0
    %v2870 = vsel %vm2823, %v2779, 0
    %v2873 = vsel %vm2823, %v2780, 0
    %v2876 = vsel %vm2823, %v2781, 0
    %v2879 = vsel %vm2823, %v2782, 0
    %v2882 = vsel %vm2823, %v2783, 0
    %v2885 = vsel %vm2823, %v2784, 0
    %v2888 = vsel %vm2823, %v2785, 0
    %v2891 = vsel %vm2823, %v2786, 0
    %v2894 = vsel %vm2823, %v2787, 0
    %v2897 = vsel %vm2823, %v2788, 0
    %v2900 = vsel %vm2823, %v2789, 0
    %v2903 = vsel %vm2823, %v2790, 0
    %v2906 = vsel %vm2823, %v2791, 0
    %v2909 = vsel %vm2823, %v2792, 0
    %v2912 = vsel %vm2823, %v2793, 0
    %v2915 = vsel %vm2823, %v2794, 0
    %v2918 = vsel %vm2823, %v2795, 0
    %vm2920 = vcmask 1041408
    %v2922 = vsel %vm2920, %v2820, 0
    %2924 = vmatprep.subr.bf16.mxu0 0
    %2925 = vmatpush1.bf16.msra.mxu0 0
    %2926 = vmatprep.subr.bf16.mxu0 0
    %2927 = vmatpush1.bf16.msra.mxu0 0
    %2928 = vmatprep.subr.bf16.mxu0 0
    %2929 = vmatpush1.bf16.msra.mxu0 0
    %2930 = vmatprep.subr.bf16.mxu0 0
    %2931 = vmatpush1.bf16.msra.mxu0 0
    %2932 = vmatprep.subr.bf16.mxu0 0
    %2933 = vmatpush1.bf16.msra.mxu0 0
    %2934 = vmatprep.subr.bf16.mxu0 0
    %2935 = vmatpush1.bf16.msra.mxu0 %v2922
    %2936 = vmatprep.subr.bf16.mxu0 0
    %2937 = vmatpush1.bf16.msra.mxu0 %v2819
    %2938 = vmatprep.subr.bf16.mxu0 0
    %2939 = vmatpush1.bf16.msra.mxu0 %v2818
    %2940 = vmatprep.subr.bf16.mxu0 0
    %2941 = vmatpush2.bf16.msra.mxu0 0
    %2942 = vmatprep.subr.bf16.mxu0 0
    %2943 = vmatpush2.bf16.msra.mxu0 0
    %2944 = vmatprep.subr.bf16.mxu0 0
    %2945 = vmatpush2.bf16.msra.mxu0 0
    %2946 = vmatprep.subr.bf16.mxu0 0
    %2947 = vmatpush2.bf16.msra.mxu0 0
    %2948 = vmatprep.subr.bf16.mxu0 0
    %2949 = vmatpush2.bf16.msra.mxu0 0
    %2950 = vmatprep.subr.bf16.mxu0 0
    %2951 = vmatpush2.bf16.msra.mxu0 0
    %2952 = vmatprep.subr.bf16.mxu0 0
    %2953 = vmatpush2.bf16.msra.mxu0 0
    %2954 = vmatprep.subr.bf16.mxu0 0
    %2955 = vmatpush2.bf16.msra.mxu0 0
    %2956 = vmatprep.mubr.bf16.mxu0 0
    %2957 = vmatmul.mubr.bf16.gmra.mxu0 %v2825
    %v2958 = vpop.f32.mrf.mxu0
    %v2959 = vadd.f32 %v2806, %v2958
    %v2960 = vpop.f32.mrf.mxu0
    %v2961 = vpop.f32.mrf.mxu0
    %v2962 = vadd.f32 %v2806, %v2961
    %v2963 = vpop.f32.mrf.mxu0
    %2964 = vmatprep.mubr.bf16.mxu0 0
    %2965 = vmatmul.mubr.bf16.gmra.mxu0 %v2828
    %v2966 = vpop.f32.mrf.mxu0
    %v2967 = vadd.f32 %v2806, %v2966
    %v2968 = vpop.f32.mrf.mxu0
    %v2969 = vpop.f32.mrf.mxu0
    %v2970 = vadd.f32 %v2806, %v2969
    %v2971 = vpop.f32.mrf.mxu0
    %2972 = vmatprep.mubr.bf16.mxu0 0
    %2973 = vmatmul.mubr.bf16.gmra.mxu0 %v2831
    %v2974 = vpop.f32.mrf.mxu0
    %v2975 = vadd.f32 %v2806, %v2974
    %v2976 = vpop.f32.mrf.mxu0
    %v2977 = vpop.f32.mrf.mxu0
    %v2978 = vadd.f32 %v2806, %v2977
    %v2979 = vpop.f32.mrf.mxu0
    %2980 = vmatprep.mubr.bf16.mxu0 0
    %2981 = vmatmul.mubr.bf16.gmra.mxu0 %v2834
    %v2982 = vpop.f32.mrf.mxu0
    %v2983 = vadd.f32 %v2806, %v2982
    %v2984 = vpop.f32.mrf.mxu0
    %v2985 = vpop.f32.mrf.mxu0
    %v2986 = vadd.f32 %v2806, %v2985
    %v2987 = vpop.f32.mrf.mxu0
    %2988 = vmatprep.mubr.bf16.mxu0 0
    %2989 = vmatmul.mubr.bf16.gmra.mxu0 %v2837
    %v2990 = vpop.f32.mrf.mxu0
    %v2991 = vadd.f32 %v2806, %v2990
    %v2992 = vpop.f32.mrf.mxu0
    %v2993 = vpop.f32.mrf.mxu0
    %v2994 = vadd.f32 %v2806, %v2993
    %v2995 = vpop.f32.mrf.mxu0
    %2996 = vmatprep.mubr.bf16.mxu0 0
    %2997 = vmatmul.mubr.bf16.gmra.mxu0 %v2840
    %v2998 = vpop.f32.mrf.mxu0
    %v2999 = vadd.f32 %v2806, %v2998
    %v3000 = vpop.f32.mrf.mxu0
    %v3001 = vpop.f32.mrf.mxu0
    %v3002 = vadd.f32 %v2806, %v3001
    %v3003 = vpop.f32.mrf.mxu0
    %3004 = vmatprep.mubr.bf16.mxu0 0
    %3005 = vmatmul.mubr.bf16.gmra.mxu0 %v2843
    %v3006 = vpop.f32.mrf.mxu0
    %v3007 = vadd.f32 %v2806, %v3006
    %v3008 = vpop.f32.mrf.mxu0
    %v3009 = vpop.f32.mrf.mxu0
    %v3010 = vadd.f32 %v2806, %v3009
    %v3011 = vpop.f32.mrf.mxu0
    %3012 = vmatprep.mubr.bf16.mxu0 0
    %3013 = vmatmul.mubr.bf16.gmra.mxu0 %v2846
    %v3014 = vpop.f32.mrf.mxu0
    %v3015 = vadd.f32 %v2806, %v3014
    %v3016 = vpop.f32.mrf.mxu0
    %v3017 = vpop.f32.mrf.mxu0
    %v3018 = vadd.f32 %v2806, %v3017
    %v3019 = vpop.f32.mrf.mxu0
    %3020 = vmatprep.mubr.bf16.mxu0 0
    %3021 = vmatmul.mubr.bf16.gmra.mxu0 %v2849
    %v3022 = vpop.f32.mrf.mxu0
    %v3023 = vadd.f32 %v2806, %v3022
    %v3024 = vpop.f32.mrf.mxu0
    %v3025 = vpop.f32.mrf.mxu0
    %v3026 = vadd.f32 %v2806, %v3025
    %v3027 = vpop.f32.mrf.mxu0
    %3028 = vmatprep.mubr.bf16.mxu0 0
    %3029 = vmatmul.mubr.bf16.gmra.mxu0 %v2852
    %v3030 = vpop.f32.mrf.mxu0
    %v3031 = vadd.f32 %v2806, %v3030
    %v3032 = vpop.f32.mrf.mxu0
    %v3033 = vpop.f32.mrf.mxu0
    %v3034 = vadd.f32 %v2806, %v3033
    %v3035 = vpop.f32.mrf.mxu0
    %3036 = vmatprep.mubr.bf16.mxu0 0
    %3037 = vmatmul.mubr.bf16.gmra.mxu0 %v2855
    %v3038 = vpop.f32.mrf.mxu0
    %v3039 = vadd.f32 %v2806, %v3038
    %v3040 = vpop.f32.mrf.mxu0
    %v3041 = vpop.f32.mrf.mxu0
    %v3042 = vadd.f32 %v2806, %v3041
    %v3043 = vpop.f32.mrf.mxu0
    %3044 = vmatprep.mubr.bf16.mxu0 0
    %3045 = vmatmul.mubr.bf16.gmra.mxu0 %v2858
    %v3046 = vpop.f32.mrf.mxu0
    %v3047 = vadd.f32 %v2806, %v3046
    %v3048 = vpop.f32.mrf.mxu0
    %v3049 = vpop.f32.mrf.mxu0
    %v3050 = vadd.f32 %v2806, %v3049
    %v3051 = vpop.f32.mrf.mxu0
    %3052 = vmatprep.mubr.bf16.mxu0 0
    %3053 = vmatmul.mubr.bf16.gmra.mxu0 %v2861
    %v3054 = vpop.f32.mrf.mxu0
    %v3055 = vadd.f32 %v2806, %v3054
    %v3056 = vpop.f32.mrf.mxu0
    %v3057 = vpop.f32.mrf.mxu0
    %v3058 = vadd.f32 %v2806, %v3057
    %v3059 = vpop.f32.mrf.mxu0
    %3060 = vmatprep.mubr.bf16.mxu0 0
    %3061 = vmatmul.mubr.bf16.gmra.mxu0 %v2864
    %v3062 = vpop.f32.mrf.mxu0
    %v3063 = vadd.f32 %v2806, %v3062
    %v3064 = vpop.f32.mrf.mxu0
    %v3065 = vpop.f32.mrf.mxu0
    %v3066 = vadd.f32 %v2806, %v3065
    %v3067 = vpop.f32.mrf.mxu0
    %3068 = vmatprep.mubr.bf16.mxu0 0
    %3069 = vmatmul.mubr.bf16.gmra.mxu0 %v2867
    %v3070 = vpop.f32.mrf.mxu0
    %v3071 = vadd.f32 %v2806, %v3070
    %v3072 = vpop.f32.mrf.mxu0
    %v3073 = vpop.f32.mrf.mxu0
    %v3074 = vadd.f32 %v2806, %v3073
    %v3075 = vpop.f32.mrf.mxu0
    %3076 = vmatprep.mubr.bf16.mxu0 0
    %3077 = vmatmul.mubr.bf16.gmra.mxu0 %v2870
    %v3078 = vpop.f32.mrf.mxu0
    %v3079 = vadd.f32 %v2806, %v3078
    %v3080 = vpop.f32.mrf.mxu0
    %v3081 = vpop.f32.mrf.mxu0
    %v3082 = vadd.f32 %v2806, %v3081
    %v3083 = vpop.f32.mrf.mxu0
    %3084 = vmatprep.mubr.bf16.mxu0 0
    %3085 = vmatmul.mubr.bf16.gmra.mxu0 %v2873
    %v3086 = vpop.f32.mrf.mxu0
    %v3087 = vadd.f32 %v2806, %v3086
    %v3088 = vpop.f32.mrf.mxu0
    %v3089 = vpop.f32.mrf.mxu0
    %v3090 = vadd.f32 %v2806, %v3089
    %v3091 = vpop.f32.mrf.mxu0
    %3092 = vmatprep.mubr.bf16.mxu0 0
    %3093 = vmatmul.mubr.bf16.gmra.mxu0 %v2876
    %v3094 = vpop.f32.mrf.mxu0
    %v3095 = vadd.f32 %v2806, %v3094
    %v3096 = vpop.f32.mrf.mxu0
    %v3097 = vpop.f32.mrf.mxu0
    %v3098 = vadd.f32 %v2806, %v3097
    %v3099 = vpop.f32.mrf.mxu0
    %3100 = vmatprep.mubr.bf16.mxu0 0
    %3101 = vmatmul.mubr.bf16.gmra.mxu0 %v2879
    %v3102 = vpop.f32.mrf.mxu0
    %v3103 = vadd.f32 %v2806, %v3102
    %v3104 = vpop.f32.mrf.mxu0
    %v3105 = vpop.f32.mrf.mxu0
    %v3106 = vadd.f32 %v2806, %v3105
    %v3107 = vpop.f32.mrf.mxu0
    %3108 = vmatprep.mubr.bf16.mxu0 0
    %3109 = vmatmul.mubr.bf16.gmra.mxu0 %v2882
    %v3110 = vpop.f32.mrf.mxu0
    %v3111 = vadd.f32 %v2806, %v3110
    %v3112 = vpop.f32.mrf.mxu0
    %v3113 = vpop.f32.mrf.mxu0
    %v3114 = vadd.f32 %v2806, %v3113
    %v3115 = vpop.f32.mrf.mxu0
    %3116 = vmatprep.mubr.bf16.mxu0 0
    %3117 = vmatmul.mubr.bf16.gmra.mxu0 %v2885
    %v3118 = vpop.f32.mrf.mxu0
    %v3119 = vadd.f32 %v2806, %v3118
    %v3120 = vpop.f32.mrf.mxu0
    %v3121 = vpop.f32.mrf.mxu0
    %v3122 = vadd.f32 %v2806, %v3121
    %v3123 = vpop.f32.mrf.mxu0
    %3124 = vmatprep.mubr.bf16.mxu0 0
    %3125 = vmatmul.mubr.bf16.gmra.mxu0 %v2888
    %v3126 = vpop.f32.mrf.mxu0
    %v3127 = vadd.f32 %v2806, %v3126
    %v3128 = vpop.f32.mrf.mxu0
    %v3129 = vpop.f32.mrf.mxu0
    %v3130 = vadd.f32 %v2806, %v3129
    %v3131 = vpop.f32.mrf.mxu0
    %3132 = vmatprep.mubr.bf16.mxu0 0
    %3133 = vmatmul.mubr.bf16.gmra.mxu0 %v2891
    %v3134 = vpop.f32.mrf.mxu0
    %v3135 = vadd.f32 %v2806, %v3134
    %v3136 = vpop.f32.mrf.mxu0
    %v3137 = vpop.f32.mrf.mxu0
    %v3138 = vadd.f32 %v2806, %v3137
    %v3139 = vpop.f32.mrf.mxu0
    %3140 = vmatprep.mubr.bf16.mxu0 0
    %3141 = vmatmul.mubr.bf16.gmra.mxu0 %v2894
    %v3142 = vpop.f32.mrf.mxu0
    %v3143 = vadd.f32 %v2806, %v3142
    %v3144 = vpop.f32.mrf.mxu0
    %v3145 = vpop.f32.mrf.mxu0
    %v3146 = vadd.f32 %v2806, %v3145
    %v3147 = vpop.f32.mrf.mxu0
    %3148 = vmatprep.mubr.bf16.mxu0 0
    %3149 = vmatmul.mubr.bf16.gmra.mxu0 %v2897
    %v3150 = vpop.f32.mrf.mxu0
    %v3151 = vadd.f32 %v2806, %v3150
    %v3152 = vpop.f32.mrf.mxu0
    %v3153 = vpop.f32.mrf.mxu0
    %v3154 = vadd.f32 %v2806, %v3153
    %v3155 = vpop.f32.mrf.mxu0
    %3156 = vmatprep.mubr.bf16.mxu0 0
    %3157 = vmatmul.mubr.bf16.gmra.mxu0 %v2900
    %v3158 = vpop.f32.mrf.mxu0
    %v3159 = vadd.f32 %v2806, %v3158
    %v3160 = vpop.f32.mrf.mxu0
    %v3161 = vpop.f32.mrf.mxu0
    %v3162 = vadd.f32 %v2806, %v3161
    %v3163 = vpop.f32.mrf.mxu0
    %3164 = vmatprep.mubr.bf16.mxu0 0
    %3165 = vmatmul.mubr.bf16.gmra.mxu0 %v2903
    %v3166 = vpop.f32.mrf.mxu0
    %v3167 = vadd.f32 %v2806, %v3166
    %v3168 = vpop.f32.mrf.mxu0
    %v3169 = vpop.f32.mrf.mxu0
    %v3170 = vadd.f32 %v2806, %v3169
    %v3171 = vpop.f32.mrf.mxu0
    %3172 = vmatprep.mubr.bf16.mxu0 0
    %3173 = vmatmul.mubr.bf16.gmra.mxu0 %v2906
    %v3174 = vpop.f32.mrf.mxu0
    %v3175 = vadd.f32 %v2806, %v3174
    %v3176 = vpop.f32.mrf.mxu0
    %v3177 = vpop.f32.mrf.mxu0
    %v3178 = vadd.f32 %v2806, %v3177
    %v3179 = vpop.f32.mrf.mxu0
    %3180 = vmatprep.mubr.bf16.mxu0 0
    %3181 = vmatmul.mubr.bf16.gmra.mxu0 %v2909
    %v3182 = vpop.f32.mrf.mxu0
    %v3183 = vadd.f32 %v2806, %v3182
    %v3184 = vpop.f32.mrf.mxu0
    %v3185 = vpop.f32.mrf.mxu0
    %v3186 = vadd.f32 %v2806, %v3185
    %v3187 = vpop.f32.mrf.mxu0
    %3188 = vmatprep.mubr.bf16.mxu0 0
    %3189 = vmatmul.mubr.bf16.gmra.mxu0 %v2912
    %v3190 = vpop.f32.mrf.mxu0
    %v3191 = vadd.f32 %v2806, %v3190
    %v3192 = vpop.f32.mrf.mxu0
    %v3193 = vpop.f32.mrf.mxu0
    %v3194 = vadd.f32 %v2806, %v3193
    %v3195 = vpop.f32.mrf.mxu0
    %3196 = vmatprep.mubr.bf16.mxu0 0
    %3197 = vmatmul.mubr.bf16.gmra.mxu0 %v2915
    %v3198 = vpop.f32.mrf.mxu0
    %v3199 = vadd.f32 %v2806, %v3198
    %v3200 = vpop.f32.mrf.mxu0
    %v3201 = vpop.f32.mrf.mxu0
    %v3202 = vadd.f32 %v2806, %v3201
    %v3203 = vpop.f32.mrf.mxu0
    %3204 = vmatprep.mubr.bf16.mxu0 0
    %3205 = vmatmul.mubr.bf16.gmra.mxu0 %v2918
    %v3206 = vpop.f32.mrf.mxu0
    %v3207 = vadd.f32 %v2806, %v3206
    %v3208 = vpop.f32.mrf.mxu0
    %v3209 = vpop.f32.mrf.mxu0
    %v3210 = vadd.f32 %v2806, %v3209
    %v3211 = vpop.f32.mrf.mxu0
    %3212 = vdwg.mxu0
    %v3213 = vmax.f32 %v2959, 0.0
    %v3214 = vmax.f32 %v2962, 0.0
    %v3215 = vmax.f32 %v2967, 0.0
    %v3216 = vmax.f32 %v2970, 0.0
    %v3217 = vmax.f32 %v2975, 0.0
    %v3218 = vmax.f32 %v2978, 0.0
    %v3219 = vmax.f32 %v2983, 0.0
    %v3220 = vmax.f32 %v2986, 0.0
    %v3221 = vmax.f32 %v2991, 0.0
    %v3222 = vmax.f32 %v2994, 0.0
    %v3223 = vmax.f32 %v2999, 0.0
    %v3224 = vmax.f32 %v3002, 0.0
    %v3225 = vmax.f32 %v3007, 0.0
    %v3226 = vmax.f32 %v3010, 0.0
    %v3227 = vmax.f32 %v3015, 0.0
    %v3228 = vmax.f32 %v3018, 0.0
    %v3229 = vmax.f32 %v3023, 0.0
    %v3230 = vmax.f32 %v3026, 0.0
    %v3231 = vmax.f32 %v3031, 0.0
    %v3232 = vmax.f32 %v3034, 0.0
    %v3233 = vmax.f32 %v3039, 0.0
    %v3234 = vmax.f32 %v3042, 0.0
    %v3235 = vmax.f32 %v3047, 0.0
    %v3236 = vmax.f32 %v3050, 0.0
    %v3237 = vmax.f32 %v3055, 0.0
    %v3238 = vmax.f32 %v3058, 0.0
    %v3239 = vmax.f32 %v3063, 0.0
    %v3240 = vmax.f32 %v3066, 0.0
    %v3241 = vmax.f32 %v3071, 0.0
    %v3242 = vmax.f32 %v3074, 0.0
    %v3243 = vmax.f32 %v3079, 0.0
    %v3244 = vmax.f32 %v3082, 0.0
    %v3245 = vmax.f32 %v3087, 0.0
    %v3246 = vmax.f32 %v3090, 0.0
    %v3247 = vmax.f32 %v3095, 0.0
    %v3248 = vmax.f32 %v3098, 0.0
    %v3249 = vmax.f32 %v3103, 0.0
    %v3250 = vmax.f32 %v3106, 0.0
    %v3251 = vmax.f32 %v3111, 0.0
    %v3252 = vmax.f32 %v3114, 0.0
    %v3253 = vmax.f32 %v3119, 0.0
    %v3254 = vmax.f32 %v3122, 0.0
    %v3255 = vmax.f32 %v3127, 0.0
    %v3256 = vmax.f32 %v3130, 0.0
    %v3257 = vmax.f32 %v3135, 0.0
    %v3258 = vmax.f32 %v3138, 0.0
    %v3259 = vmax.f32 %v3143, 0.0
    %v3260 = vmax.f32 %v3146, 0.0
    %v3261 = vmax.f32 %v3151, 0.0
    %v3262 = vmax.f32 %v3154, 0.0
    %v3263 = vmax.f32 %v3159, 0.0
    %v3264 = vmax.f32 %v3162, 0.0
    %v3265 = vmax.f32 %v3167, 0.0
    %v3266 = vmax.f32 %v3170, 0.0
    %v3267 = vmax.f32 %v3175, 0.0
    %v3268 = vmax.f32 %v3178, 0.0
    %v3269 = vmax.f32 %v3183, 0.0
    %v3270 = vmax.f32 %v3186, 0.0
    %v3271 = vmax.f32 %v3191, 0.0
    %v3272 = vmax.f32 %v3194, 0.0
    %v3273 = vmax.f32 %v3199, 0.0
    %v3274 = vmax.f32 %v3202, 0.0
    %v3275 = vmax.f32 %v3207, 0.0
    %v3276 = vmax.f32 %v3210, 0.0
    %v3277 = vsel %vm2439, %v3213, 0.0
    %v3278 = vsel %vm2439, %v3214, 0.0
    %v3279 = vadd.f32 %v3277, %v3278
    %v3280 = vsel %vm2439, %v3215, 0.0
    %v3281 = vadd.f32 %v3279, %v3280
    %v3282 = vsel %vm2439, %v3216, 0.0
    %v3283 = vadd.f32 %v3281, %v3282
    %v3284 = vsel %vm2439, %v3217, 0.0
    %v3285 = vadd.f32 %v3283, %v3284
    %v3286 = vsel %vm2439, %v3218, 0.0
    %v3287 = vadd.f32 %v3285, %v3286
    %v3288 = vsel %vm2439, %v3219, 0.0
    %v3289 = vadd.f32 %v3287, %v3288
    %v3290 = vsel %vm2439, %v3220, 0.0
    %v3291 = vadd.f32 %v3289, %v3290
    %v3292 = vsel %vm2439, %v3221, 0.0
    %v3293 = vadd.f32 %v3291, %v3292
    %v3294 = vsel %vm2439, %v3222, 0.0
    %v3295 = vadd.f32 %v3293, %v3294
    %v3296 = vsel %vm2439, %v3223, 0.0
    %v3297 = vadd.f32 %v3295, %v3296
    %v3298 = vsel %vm2439, %v3224, 0.0
    %v3299 = vadd.f32 %v3297, %v3298
    %v3300 = vsel %vm2439, %v3225, 0.0
    %v3301 = vadd.f32 %v3299, %v3300
    %v3302 = vsel %vm2439, %v3226, 0.0
    %v3303 = vadd.f32 %v3301, %v3302
    %v3304 = vsel %vm2439, %v3227, 0.0
    %v3305 = vadd.f32 %v3303, %v3304
    %v3306 = vsel %vm2439, %v3228, 0.0
    %v3307 = vadd.f32 %v3305, %v3306
    %v3308 = vsel %vm2439, %v3229, 0.0
    %v3309 = vadd.f32 %v3307, %v3308
    %v3310 = vsel %vm2439, %v3230, 0.0
    %v3311 = vadd.f32 %v3309, %v3310
    %v3312 = vsel %vm2439, %v3231, 0.0
    %v3313 = vadd.f32 %v3311, %v3312
    %v3314 = vsel %vm2439, %v3232, 0.0
    %v3315 = vadd.f32 %v3313, %v3314
    %v3316 = vsel %vm2439, %v3233, 0.0
    %v3317 = vadd.f32 %v3315, %v3316
    %v3318 = vsel %vm2439, %v3234, 0.0
    %v3319 = vadd.f32 %v3317, %v3318
    %v3320 = vsel %vm2439, %v3235, 0.0
    %v3321 = vadd.f32 %v3319, %v3320
    %v3322 = vsel %vm2439, %v3236, 0.0
    %v3323 = vadd.f32 %v3321, %v3322
    %v3324 = vsel %vm2439, %v3237, 0.0
    %v3325 = vadd.f32 %v3323, %v3324
    %v3326 = vsel %vm2439, %v3238, 0.0
    %v3327 = vadd.f32 %v3325, %v3326
    %v3328 = vsel %vm2439, %v3239, 0.0
    %v3329 = vadd.f32 %v3327, %v3328
    %v3330 = vsel %vm2439, %v3240, 0.0
    %v3331 = vadd.f32 %v3329, %v3330
    %v3332 = vsel %vm2439, %v3241, 0.0
    %v3333 = vadd.f32 %v3331, %v3332
    %v3334 = vsel %vm2439, %v3242, 0.0
    %v3335 = vadd.f32 %v3333, %v3334
    %v3336 = vsel %vm2439, %v3243, 0.0
    %v3337 = vadd.f32 %v3335, %v3336
    %v3338 = vsel %vm2439, %v3244, 0.0
    %v3339 = vadd.f32 %v3337, %v3338
    %v3340 = vrot.slane %v3339, 4
    %v3341 = vadd.f32 %v3339, %v3340
    %v3342 = vrot.slane %v3341, 2
    %v3343 = vadd.f32 %v3341, %v3342
    %v3344 = vrot.slane %v3343, 1
    %v3345 = vadd.f32 %v3343, %v3344
    %v3346 = vsel %vm2439, %v3245, 0.0
    %v3347 = vsel %vm2439, %v3246, 0.0
    %v3348 = vadd.f32 %v3346, %v3347
    %v3349 = vsel %vm2439, %v3247, 0.0
    %v3350 = vadd.f32 %v3348, %v3349
    %v3351 = vsel %vm2439, %v3248, 0.0
    %v3352 = vadd.f32 %v3350, %v3351
    %v3353 = vsel %vm2439, %v3249, 0.0
    %v3354 = vadd.f32 %v3352, %v3353
    %v3355 = vsel %vm2439, %v3250, 0.0
    %v3356 = vadd.f32 %v3354, %v3355
    %v3357 = vsel %vm2439, %v3251, 0.0
    %v3358 = vadd.f32 %v3356, %v3357
    %v3359 = vsel %vm2439, %v3252, 0.0
    %v3360 = vadd.f32 %v3358, %v3359
    %v3361 = vsel %vm2439, %v3253, 0.0
    %v3362 = vadd.f32 %v3360, %v3361
    %v3363 = vsel %vm2439, %v3254, 0.0
    %v3364 = vadd.f32 %v3362, %v3363
    %v3365 = vsel %vm2439, %v3255, 0.0
    %v3366 = vadd.f32 %v3364, %v3365
    %v3367 = vsel %vm2439, %v3256, 0.0
    %v3368 = vadd.f32 %v3366, %v3367
    %v3369 = vsel %vm2439, %v3257, 0.0
    %v3370 = vadd.f32 %v3368, %v3369
    %v3371 = vsel %vm2439, %v3258, 0.0
    %v3372 = vadd.f32 %v3370, %v3371
    %v3373 = vsel %vm2439, %v3259, 0.0
    %v3374 = vadd.f32 %v3372, %v3373
    %v3375 = vsel %vm2439, %v3260, 0.0
    %v3376 = vadd.f32 %v3374, %v3375
    %v3377 = vsel %vm2439, %v3261, 0.0
    %v3378 = vadd.f32 %v3376, %v3377
    %v3379 = vsel %vm2439, %v3262, 0.0
    %v3380 = vadd.f32 %v3378, %v3379
    %v3381 = vsel %vm2439, %v3263, 0.0
    %v3382 = vadd.f32 %v3380, %v3381
    %v3383 = vsel %vm2439, %v3264, 0.0
    %v3384 = vadd.f32 %v3382, %v3383
    %v3385 = vsel %vm2439, %v3265, 0.0
    %v3386 = vadd.f32 %v3384, %v3385
    %v3387 = vsel %vm2439, %v3266, 0.0
    %v3388 = vadd.f32 %v3386, %v3387
    %v3389 = vsel %vm2439, %v3267, 0.0
    %v3390 = vadd.f32 %v3388, %v3389
    %v3391 = vsel %vm2439, %v3268, 0.0
    %v3392 = vadd.f32 %v3390, %v3391
    %v3393 = vsel %vm2439, %v3269, 0.0
    %v3394 = vadd.f32 %v3392, %v3393
    %v3395 = vsel %vm2439, %v3270, 0.0
    %v3396 = vadd.f32 %v3394, %v3395
    %v3397 = vsel %vm2439, %v3271, 0.0
    %v3398 = vadd.f32 %v3396, %v3397
    %v3399 = vsel %vm2439, %v3272, 0.0
    %v3400 = vadd.f32 %v3398, %v3399
    %v3401 = vsel %vm2439, %v3273, 0.0
    %v3402 = vadd.f32 %v3400, %v3401
    %v3403 = vsel %vm2439, %v3274, 0.0
    %v3404 = vadd.f32 %v3402, %v3403
    %v3405 = vsel %vm2439, %v3275, 0.0
    %v3406 = vadd.f32 %v3404, %v3405
    %v3407 = vsel %vm2439, %v3276, 0.0
    %v3408 = vadd.f32 %v3406, %v3407
    %v3409 = vrot.slane %v3408, 4
    %v3410 = vadd.f32 %v3408, %v3409
    %v3411 = vrot.slane %v3410, 2
    %v3412 = vadd.f32 %v3410, %v3411
    %v3413 = vrot.slane %v3412, 1
    %v3414 = vadd.f32 %v3412, %v3413
    %v3415 = vmul.f32 %v3345, 0.00390625
    %v3416 = vmul.f32 %v3414, 0.00390625
    %v3417 = vpack.c.bf16 %v3415, %v3415
    %v3418 = vpack.c.bf16 %v3416, %v3416
    %v3419 = vld [vmem:[%s3] sm:$0xf]
    %v3420 = vld [vmem:[%s3 + $0x4] sm:$0xf]
    %v3421 = vld [vmem:[%s4] sm:$0x1]
    %v3423 = vlaneseq
    %v3424 = vshrl.u32 %v3423, 7
    %v3425 = vsub.s32 0, %v3424
    %v3426 = vrot.slane %v3421, %v3425
    %v3430 = vunpack.c.l.b16 %v3417
    %v3431 = vunpack.c.l.b16 %v3418
    %vm3432 = vcmask 1041409
    %v3433 = vsel %vm3432, %v3431, %v3430
    %v3434 = vpack.c.b16 %v3433, %v3433
    %v3437 = vunpack.c.l.b16 %v3419
    %v3438 = vunpack.c.l.b16 %v3420
    %v3439 = vpack.c.b16 %v3438, %v3437
    %v3442 = vsel %vm2439, %v3434, 0
    %3444 = vmatprep.subr.bf16.mxu0 0
    %3445 = vmatpush1.bf16.msra.mxu0 0
    %3446 = vmatprep.subr.bf16.mxu0 0
    %3447 = vmatpush1.bf16.msra.mxu0 0
    %3448 = vmatprep.subr.bf16.mxu0 0
    %3449 = vmatpush1.bf16.msra.mxu0 0
    %3450 = vmatprep.subr.bf16.mxu0 0
    %3451 = vmatpush1.bf16.msra.mxu0 0
    %3452 = vmatprep.subr.bf16.mxu0 0
    %3453 = vmatpush1.bf16.msra.mxu0 0
    %3454 = vmatprep.subr.bf16.mxu0 0
    %3455 = vmatpush1.bf16.msra.mxu0 0
    %3456 = vmatprep.subr.bf16.mxu0 0
    %3457 = vmatpush1.bf16.msra.mxu0 0
    %3458 = vmatprep.subr.bf16.mxu0 0
    %3459 = vmatpush1.bf16.msra.mxu0 %v3439
    %3460 = vmatprep.subr.bf16.mxu0 0
    %3461 = vmatpush2.bf16.msra.mxu0 0
    %3462 = vmatprep.subr.bf16.mxu0 0
    %3463 = vmatpush2.bf16.msra.mxu0 0
    %3464 = vmatprep.subr.bf16.mxu0 0
    %3465 = vmatpush2.bf16.msra.mxu0 0
    %3466 = vmatprep.subr.bf16.mxu0 0
    %3467 = vmatpush2.bf16.msra.mxu0 0
    %3468 = vmatprep.subr.bf16.mxu0 0
    %3469 = vmatpush2.bf16.msra.mxu0 0
    %3470 = vmatprep.subr.bf16.mxu0 0
    %3471 = vmatpush2.bf16.msra.mxu0 0
    %3472 = vmatprep.subr.bf16.mxu0 0
    %3473 = vmatpush2.bf16.msra.mxu0 0
    %3474 = vmatprep.subr.bf16.mxu0 0
    %3475 = vmatpush2.bf16.msra.mxu0 0
    %3476 = vmatprep.mubr.bf16.mxu0 0
    %3477 = vmatmul.mubr.bf16.gmra.mxu0 %v3442
    %v3478 = vpop.f32.mrf.mxu0
    %v3479 = vadd.f32 %v3426, %v3478
    %v3480 = vpop.f32.mrf.mxu0
    %v3481 = vpop.f32.mrf.mxu0
    %v3482 = vpop.f32.mrf.mxu0
    %3483 = vdwg.mxu0
    %vm3484 = vcmask 58368
    %3485 = vst.msk [vmem:[#allocation2] sm:$0x3] %vm3484, %v3479
    // Predicated region
    $region22: #{wrapper_forward.1} parent=1 // pred_check
      _
    $region23: #{wrapper_forward.1} parent=1 // pred_check_branch
      %3487 = sbr.rel (0) target = $region25
    $region24: #{wrapper_forward.1} parent=1 // pred_region
      %s3489 = ssub.s32 32, 32
      %3490 = vsyncadd [#allocation3], %s3489
      %s3492 = sshll.u32 [#allocation2], 4
      %s3493 = int_to_ptr.vmem [resolvable:$true] %s3492
      %3495 = dma.vmem_to_hbm [thread:$0]  %s3493, 32, %s5, [#allocation3]
    $region25: #{wrapper_forward.1} parent=1 // pred_fallthru
      _
    // Predicated region
    $region26: #{wrapper_forward.1} parent=1 // pred_check
      _
    $region27: #{wrapper_forward.1} parent=1 // pred_check_branch
      %3497 = sbr.rel (0) target = $region29
    $region28: #{wrapper_forward.1} parent=1 // pred_region
      %3498 = dma.done [#allocation3], 32
    $region29: #{wrapper_forward.1} parent=1 // pred_fallthru
      _
    %3499 = vsyncpa [#allocation3], 1

</llo_original>
